<compile_context>
chip_gen: v7x
topology: tpu7x:2x2x1
jax: 0.10.0
libtpu: 0.0.40
codegen_flags: <defaults>
</compile_context>

<pallas_src>
import numpy as np
import jax
import jax.numpy as jnp
from jax.experimental import pallas as pl
from jax.experimental.pallas import tpu as pltpu

# ---------------------------------------------------------------------------
# Wavelet filter banks, hard-coded so the script needs no pywt / checkpoints.
# ---------------------------------------------------------------------------
HAAR_REC_LO = [0.7071067811865476, 0.7071067811865476]
HAAR_REC_HI = [0.7071067811865476, -0.7071067811865476]
DB2_REC_LO = [0.48296291314469025, 0.836516303737469,
              0.22414386804185735, -0.12940952255092145]
DB2_REC_HI = [-0.12940952255092145, -0.22414386804185735,
              0.836516303737469, -0.48296291314469025]


def build_dwt_matrices(depth, height, width, band_low, band_high):
    """Faithful host-side re-implementation of DWT_3D.get_matrix (numpy float32)."""
    band_length = len(band_low)
    assert band_length == len(band_high) and band_length % 2 == 0
    half = band_length // 2

    l1_max = max(height, width)
    l_half = l1_max // 2
    matrix_h = np.zeros((l_half, l1_max + band_length - 2))
    matrix_g = np.zeros((l1_max - l_half, l1_max + band_length - 2))
    end = None if half == 1 else -half + 1

    index = 0
    for i in range(l_half):
        for j in range(band_length):
            matrix_h[i, index + j] = band_low[j]
        index += 2
    matrix_h_0 = matrix_h[0:height // 2, 0:height + band_length - 2]
    matrix_h_1 = matrix_h[0:width // 2, 0:width + band_length - 2]
    matrix_h_2 = matrix_h[0:depth // 2, 0:depth + band_length - 2]

    index = 0
    for i in range(l1_max - l_half):
        for j in range(band_length):
            matrix_g[i, index + j] = band_high[j]
        index += 2
    matrix_g_0 = matrix_g[0:height - height // 2, 0:height + band_length - 2]
    matrix_g_1 = matrix_g[0:width - width // 2, 0:width + band_length - 2]
    matrix_g_2 = matrix_g[0:depth - depth // 2, 0:depth + band_length - 2]

    matrix_h_0 = matrix_h_0[:, half - 1:end]
    matrix_h_1 = np.transpose(matrix_h_1[:, half - 1:end])
    matrix_h_2 = matrix_h_2[:, half - 1:end]
    matrix_g_0 = matrix_g_0[:, half - 1:end]
    matrix_g_1 = np.transpose(matrix_g_1[:, half - 1:end])
    matrix_g_2 = matrix_g_2[:, half - 1:end]

    f32 = lambda a: np.asarray(a, dtype=np.float32)
    # (low_0 (H/2,H), low_1 (W,W/2), low_2 (D/2,D), high_0, high_1, high_2)
    return (f32(matrix_h_0), f32(matrix_h_1), f32(matrix_h_2),
            f32(matrix_g_0), f32(matrix_g_1), f32(matrix_g_2))


def _taps_from_matrix(m):
    """Extract (offset, coeff) taps from a (D/2, D) DWT depth matrix.

    Row p has coefficient c at column 2*p + offset; taps whose column fell outside
    [0, D) were cropped by get_matrix's boundary handling (reproduced by dropping
    out-of-range source depths in the kernel)."""
    m = np.asarray(m, np.float64)
    dh, d = m.shape
    taps = {}
    for p in range(dh):
        for col in range(d):
            v = float(m[p, col])
            if v == 0.0:
                continue
            off = col - 2 * p
            if off in taps:
                if abs(taps[off] - v) > 1e-10:
                    raise ValueError("unexpected DWT depth-matrix structure")
            else:
                taps[off] = v
    return tuple(sorted(taps.items()))


# ---------------------------------------------------------------------------
# VMEM budgeting / tiling choice (generation-aware, counts intermediates).
# ---------------------------------------------------------------------------
def _padded_plane_bytes(rows, cols):
    return (-(-rows // 8) * 8) * (-(-cols // 128) * 128) * 4


def _vmem_bytes_per_step(tb, d, h, w):
    dh, hh, wh = d // 2, h // 2, w // 2
    in_block = tb * d * _padded_plane_bytes(h, w)
    out_blocks = 8 * tb * dh * _padded_plane_bytes(hh, wh)
    interm = 5 * tb * d * _padded_plane_bytes(h, w)   # matmul results / transposes / bands
    filters = _padded_plane_bytes(w, w) + _padded_plane_bytes(h, h)
    return 2 * (in_block + out_blocks) + interm + filters   # in/out are double-buffered


def _vmem_limit_bytes():
    cap = 64 * 1024 * 1024              # conservative default (v7x physical VMEM)
    try:
        cap = int(pltpu.get_tpu_info().vmem_capacity_bytes)
    except Exception:
        pass
    # ~70% of physical: v7x (64 MiB) -> ~45 MiB, v5e/v6e (128 MiB) -> capped at 96 MiB.
    return max(16 * 1024 * 1024, min(96 * 1024 * 1024, int(cap * 0.7)))


def _choose_tb(batch, d, h, w, budget_bytes, min_steps=8):
    divisors = [t for t in range(1, batch + 1) if batch % t == 0]
    fits = [t for t in divisors if _vmem_bytes_per_step(t, d, h, w) <= budget_bytes]
    if not fits:
        fits = [1]
    for steps in (min_steps, 2):
        pref = [t for t in fits if batch // t >= steps]
        if pref:
            return max(pref)
    # TODO(synk): when N*C is tiny, add a second grid axis over D (with a halo for
    # wavelets longer than Haar) instead of giving up on pipelining depth.
    return max(fits)


# ---------------------------------------------------------------------------
# Kernel
# ---------------------------------------------------------------------------
def _make_kernel(tb, d, h, w, taps_low, taps_high):
    dh, hh, wh = d // 2, h // 2, w // 2
    tbd = tb * d

    def kernel(x_ref, mw_ref, mht_ref, *out_refs):
        # x_ref   : (tb*D, H, W)   input slabs, rows ordered (batch, depth)
        # mw_ref  : (W, W)         columns = [low_1 | high_1]
        # mht_ref : (H, H)         columns = [low_0 ; high_0]^T
        # out_refs: 8 x (tb, D/2, H/2, W/2) sub-band blocks
        x = x_ref[...]

        # --- W stage: one large-M 2-D MXU matmul --------------------------------
        t = jnp.dot(x.reshape(tbd * h, w), mw_ref[...],
                    preferred_element_type=jnp.float32)            # (tbd*H, W)

        # --- H stage: minor-dim transpose + one large-M 2-D MXU matmul ----------
        t = jnp.swapaxes(t.reshape(tbd, h, w), 1, 2)               # (tbd, W, H)
        t = jnp.dot(t.reshape(tbd * w, h), mht_ref[...],
                    preferred_element_type=jnp.float32)            # (tbd*W, H)
        t = jnp.swapaxes(t.reshape(tbd, w, h), 1, 2)               # (tbd, H, W)

        # --- D stage: tap-vectorized over all output depths (VPU) ----------------
        z = t.reshape(tb, dh, 2, h, w)                             # even/odd depth split
        planes = (z[:, :, 0], z[:, :, 1])                          # each (tb, D/2, H, W)

        def depth_band(taps):
            acc = None
            for off, coef in taps:
                parity = off & 1
                shift = (off - parity) // 2                        # source depth = p + shift
                if shift >= dh or -shift >= dh:
                    continue                                       # cropped entirely
                src = planes[parity]
                if shift > 0:
                    term = jnp.concatenate(
                        [src[:, shift:],
                         jnp.zeros((tb, shift, h, w), jnp.float32)], axis=1)
                elif shift < 0:
                    s = -shift
                    term = jnp.concatenate(
                        [jnp.zeros((tb, s, h, w), jnp.float32),
                         src[:, :dh - s]], axis=1)
                else:
                    term = src
                term = coef * term
                acc = term if acc is None else acc + term
            if acc is None:
                acc = jnp.zeros((tb, dh, h, w), jnp.float32)
            return acc

        d_bands = (depth_band(taps_low), depth_band(taps_high))   # (tb, D/2, H, W) each

        # --- band split (static slices) + 8 direct stores ------------------------
        # TODO(synk): when W/2 < 128 the per-band stores are lane-masked; a fully
        # lane-dense layout would need a fused (H*W)-minor output + XLA split.
        k = 0
        for db_i in range(2):            # depth band  (low, high)
            for hb in range(2):          # height band (low, high)
                for wb in range(2):      # width band  (low, high)
                    out_refs[k][...] = d_bands[db_i][:, :,
                                                     hb * hh:(hb + 1) * hh,
                                                     wb * wh:(wb + 1) * wh]
                    k += 1

    return kernel


# ---------------------------------------------------------------------------
# Wrapper
# ---------------------------------------------------------------------------
def dwt_3d(x, m_l0, m_l1, m_l2, m_h0, m_h1, m_h2):
    """Pallas-backed DWT_3D forward. x: (N, C, D, H, W) float32 -> 8 sub-bands."""
    assert x.ndim == 5
    N, C, D, H, W = x.shape
    # TODO(synk): odd spatial sizes (floor halving in the reference) not supported.
    assert D % 2 == 0 and H % 2 == 0 and W % 2 == 0
    Dh, Hh, Wh = D // 2, H // 2, W // 2
    B = N * C

    # Host-side parameter setup (mirrors DWT_3D.get_matrix outputs).
    m_l0, m_l1, m_l2 = (np.asarray(m, np.float32) for m in (m_l0, m_l1, m_l2))
    m_h0, m_h1, m_h2 = (np.asarray(m, np.float32) for m in (m_h0, m_h1, m_h2))
    mw = jnp.asarray(np.concatenate([m_l1, m_h1], axis=1), jnp.float32)            # (W, W)
    mht = jnp.asarray(np.concatenate([m_l0, m_h0], axis=0).T.copy(), jnp.float32)  # (H, H)
    taps_low = _taps_from_matrix(m_l2)
    taps_high = _taps_from_matrix(m_h2)

    vmem_limit = _vmem_limit_bytes()
    tb = _choose_tb(B, D, H, W, vmem_limit)
    grid = (B // tb,)

    xb = jnp.asarray(x, jnp.float32).reshape(B * D, H, W)   # free row-major merge

    kernel = _make_kernel(tb, D, H, W, taps_low, taps_high)

    band = jax.ShapeDtypeStruct((B, Dh, Hh, Wh), jnp.float32)
    out_specs = tuple(pl.BlockSpec((tb, Dh, Hh, Wh), lambda b: (b, 0, 0, 0))
                      for _ in range(8))

    grid_spec = pltpu.PrefetchScalarGridSpec(
        num_scalar_prefetch=0,
        grid=grid,
        in_specs=[
            pl.BlockSpec((tb * D, H, W), lambda b: (b, 0, 0)),   # input slabs
            pl.BlockSpec((W, W), lambda b: (0, 0)),              # W-stage filters
            pl.BlockSpec((H, H), lambda b: (0, 0)),              # H-stage filters (T)
        ],
        out_specs=out_specs,
    )

    outs = pl.pallas_call(
        kernel,
        out_shape=tuple(band for _ in range(8)),
        grid_spec=grid_spec,
        compiler_params=pltpu.CompilerParams(
            dimension_semantics=("parallel",),
            vmem_limit_bytes=vmem_limit,
        ),
    )(xb, mw, mht)

    # (B, Dh, Hh, Wh) -> (N, C, Dh, Hh, Wh): free leading-dim split, no data motion.
    return tuple(o.reshape(N, C, Dh, Hh, Wh) for o in outs)


def dwt_3d_reference(x, m_l0, m_l1, m_l2, m_h0, m_h1, m_h2):
    """Pure-JAX separable reference mirroring DWTFunction_3D."""
    m_l0, m_l1, m_l2 = (jnp.asarray(m, jnp.float32) for m in (m_l0, m_l1, m_l2))
    m_h0, m_h1, m_h2 = (jnp.asarray(m, jnp.float32) for m in (m_h0, m_h1, m_h2))
    x = jnp.asarray(x, jnp.float32)
    L = jnp.einsum('ph,ncdhw->ncdpw', m_l0, x)
    Hc = jnp.einsum('ph,ncdhw->ncdpw', m_h0, x)
    LL = jnp.einsum('ncdpw,wq->ncdpq', L, m_l1)
    LH = jnp.einsum('ncdpw,wq->ncdpq', L, m_h1)
    HL = jnp.einsum('ncdpw,wq->ncdpq', Hc, m_l1)
    HH = jnp.einsum('ncdpw,wq->ncdpq', Hc, m_h1)

    def depth(m, y):
        return jnp.einsum('rd,ncdpq->ncrpq', m, y)

    return (depth(m_l2, LL), depth(m_l2, LH), depth(m_l2, HL), depth(m_l2, HH),
            depth(m_h2, LL), depth(m_h2, LH), depth(m_h2, HL), depth(m_h2, HH))


if __name__ == "__main__":
    key = jax.random.PRNGKey(0)
    k1, k2 = jax.random.split(key)

    # --- Case 1: Haar, H == W ------------------------------------------------
    N, C, D, H, W = 2, 4, 8, 16, 16
    x = jax.random.normal(k1, (N, C, D, H, W), dtype=jnp.float32)
    mats = build_dwt_matrices(D, H, W, HAAR_REC_LO, HAAR_REC_HI)
    outs = jax.block_until_ready(dwt_3d(x, *mats))
    refs = dwt_3d_reference(x, *mats)
    for o, r in zip(outs, refs):
        assert o.shape == (N, C, D // 2, H // 2, W // 2)
        assert o.dtype == jnp.float32
        np.testing.assert_allclose(np.asarray(o), np.asarray(r), atol=1e-4, rtol=1e-4)

    # --- Case 2: db2 (4 taps, exercises boundary cropping), H != W ------------
    N2, C2, D2, H2, W2 = 1, 2, 8, 16, 32
    x2 = jax.random.normal(k2, (N2, C2, D2, H2, W2), dtype=jnp.float32)
    mats2 = build_dwt_matrices(D2, H2, W2, DB2_REC_LO, DB2_REC_HI)
    outs2 = jax.block_until_ready(dwt_3d(x2, *mats2))
    refs2 = dwt_3d_reference(x2, *mats2)
    for o, r in zip(outs2, refs2):
        assert o.shape == (N2, C2, D2 // 2, H2 // 2, W2 // 2)
        np.testing.assert_allclose(np.asarray(o), np.asarray(r), atol=1e-4, rtol=1e-4)

    print("KERNEL_OK")
</pallas_src>

<mosaic_0001>
module attributes {stable_mosaic.version = 11 : i64} {
  func.func @kernel(%arg0: i32, %arg1: memref<8x16x16xf32, #tpu.memory_space<vmem>>, %arg2: memref<16x16xf32, #tpu.memory_space<vmem>>, %arg3: memref<16x16xf32, #tpu.memory_space<vmem>>, %arg4: memref<1x4x8x8xf32, #tpu.memory_space<vmem>>, %arg5: memref<1x4x8x8xf32, #tpu.memory_space<vmem>>, %arg6: memref<1x4x8x8xf32, #tpu.memory_space<vmem>>, %arg7: memref<1x4x8x8xf32, #tpu.memory_space<vmem>>, %arg8: memref<1x4x8x8xf32, #tpu.memory_space<vmem>>, %arg9: memref<1x4x8x8xf32, #tpu.memory_space<vmem>>, %arg10: memref<1x4x8x8xf32, #tpu.memory_space<vmem>>, %arg11: memref<1x4x8x8xf32, #tpu.memory_space<vmem>>) attributes {dimension_semantics = [#tpu.dimension_semantics<parallel>], iteration_bounds = array<i64: 8>, scalar_prefetch = 0 : i64, scratch_operands = 0 : i64, tpu.core_type = #tpu.core_type<tc>, window_params = [{transform_indices = @transform_0, window_bounds = array<i64: 8, 16, 16>}, {pipeline_mode = #tpu.pipeline_mode<synchronous>, transform_indices = @transform_1, window_bounds = array<i64: 16, 16>}, {pipeline_mode = #tpu.pipeline_mode<synchronous>, transform_indices = @transform_2, window_bounds = array<i64: 16, 16>}, {transform_indices = @transform_3, window_bounds = array<i64: 1, 4, 8, 8>}, {transform_indices = @transform_4, window_bounds = array<i64: 1, 4, 8, 8>}, {transform_indices = @transform_5, window_bounds = array<i64: 1, 4, 8, 8>}, {transform_indices = @transform_6, window_bounds = array<i64: 1, 4, 8, 8>}, {transform_indices = @transform_7, window_bounds = array<i64: 1, 4, 8, 8>}, {transform_indices = @transform_8, window_bounds = array<i64: 1, 4, 8, 8>}, {transform_indices = @transform_9, window_bounds = array<i64: 1, 4, 8, 8>}, {transform_indices = @transform_10, window_bounds = array<i64: 1, 4, 8, 8>}]} {
    %c0 = arith.constant 0 : index
    %c0_0 = arith.constant 0 : index
    %c0_1 = arith.constant 0 : index
    %0 = vector.load %arg1[%c0, %c0_0, %c0_1] : memref<8x16x16xf32, #tpu.memory_space<vmem>>, vector<8x16x16xf32>
    %1 = vector.shape_cast %0 : vector<8x16x16xf32> to vector<128x16xf32>
    %c0_2 = arith.constant 0 : index
    %c0_3 = arith.constant 0 : index
    %2 = vector.load %arg2[%c0_2, %c0_3] : memref<16x16xf32, #tpu.memory_space<vmem>>, vector<16x16xf32>
    %cst = arith.constant dense<0.000000e+00> : vector<128x16xf32>
    %3 = tpu.matmul %1, %2, %cst {dimension_numbers = #tpu.dot_dimension_numbers<[1], [0], [0], [1], [0, 0, 1, 1], [], []>} : vector<128x16xf32>, vector<16x16xf32>, vector<128x16xf32> -> vector<128x16xf32>
    %4 = vector.shape_cast %3 : vector<128x16xf32> to vector<8x16x16xf32>
    %5 = tpu.transpose %4, [0, 2, 1] : vector<8x16x16xf32> -> vector<8x16x16xf32>
    %6 = vector.shape_cast %5 : vector<8x16x16xf32> to vector<128x16xf32>
    %c0_4 = arith.constant 0 : index
    %c0_5 = arith.constant 0 : index
    %7 = vector.load %arg3[%c0_4, %c0_5] : memref<16x16xf32, #tpu.memory_space<vmem>>, vector<16x16xf32>
    %cst_6 = arith.constant dense<0.000000e+00> : vector<128x16xf32>
    %8 = tpu.matmul %6, %7, %cst_6 {dimension_numbers = #tpu.dot_dimension_numbers<[1], [0], [0], [1], [0, 0, 1, 1], [], []>} : vector<128x16xf32>, vector<16x16xf32>, vector<128x16xf32> -> vector<128x16xf32>
    %9 = vector.shape_cast %8 : vector<128x16xf32> to vector<8x16x16xf32>
    %10 = tpu.transpose %9, [0, 2, 1] : vector<8x16x16xf32> -> vector<8x16x16xf32>
    %11 = vector.shape_cast %10 : vector<8x16x16xf32> to vector<1x4x2x16x16xf32>
    %12 = vector.extract_strided_slice %11 {offsets = [0, 0, 0, 0, 0], sizes = [1, 4, 1, 16, 16], strides = [1, 1, 1, 1, 1]} : vector<1x4x2x16x16xf32> to vector<1x4x1x16x16xf32>
    %13 = vector.shape_cast %12 : vector<1x4x1x16x16xf32> to vector<1x4x16x16xf32>
    %14 = vector.extract_strided_slice %11 {offsets = [0, 0, 1, 0, 0], sizes = [1, 4, 1, 16, 16], strides = [1, 1, 1, 1, 1]} : vector<1x4x2x16x16xf32> to vector<1x4x1x16x16xf32>
    %15 = vector.shape_cast %14 : vector<1x4x1x16x16xf32> to vector<1x4x16x16xf32>
    %cst_7 = arith.constant 0.707106769 : f32
    %16 = vector.broadcast %cst_7 : f32 to vector<1x4x16x16xf32>
    %17 = arith.mulf %16, %13 : vector<1x4x16x16xf32>
    %cst_8 = arith.constant 0.707106769 : f32
    %18 = vector.broadcast %cst_8 : f32 to vector<1x4x16x16xf32>
    %19 = arith.mulf %18, %15 : vector<1x4x16x16xf32>
    %20 = arith.addf %17, %19 : vector<1x4x16x16xf32>
    %cst_9 = arith.constant 0.707106769 : f32
    %21 = vector.broadcast %cst_9 : f32 to vector<1x4x16x16xf32>
    %22 = arith.mulf %21, %13 : vector<1x4x16x16xf32>
    %cst_10 = arith.constant -0.707106769 : f32
    %23 = vector.broadcast %cst_10 : f32 to vector<1x4x16x16xf32>
    %24 = arith.mulf %23, %15 : vector<1x4x16x16xf32>
    %25 = arith.addf %22, %24 : vector<1x4x16x16xf32>
    %26 = vector.extract_strided_slice %20 {offsets = [0, 0, 0, 0], sizes = [1, 4, 8, 8], strides = [1, 1, 1, 1]} : vector<1x4x16x16xf32> to vector<1x4x8x8xf32>
    %c0_11 = arith.constant 0 : index
    %c0_12 = arith.constant 0 : index
    %c0_13 = arith.constant 0 : index
    %c0_14 = arith.constant 0 : index
    %27 = vector.load %arg4[%c0_11, %c0_12, %c0_13, %c0_14] : memref<1x4x8x8xf32, #tpu.memory_space<vmem>>, vector<1x4x8x8xf32>
    tpu.vector_store %arg4[%c0_11, %c0_12, %c0_13, %c0_14], %26 {strides = array<i32>} : memref<1x4x8x8xf32, #tpu.memory_space<vmem>>, vector<1x4x8x8xf32>,
    %28 = vector.extract_strided_slice %20 {offsets = [0, 0, 0, 8], sizes = [1, 4, 8, 8], strides = [1, 1, 1, 1]} : vector<1x4x16x16xf32> to vector<1x4x8x8xf32>
    %c0_15 = arith.constant 0 : index
    %c0_16 = arith.constant 0 : index
    %c0_17 = arith.constant 0 : index
    %c0_18 = arith.constant 0 : index
    %29 = vector.load %arg5[%c0_15, %c0_16, %c0_17, %c0_18] : memref<1x4x8x8xf32, #tpu.memory_space<vmem>>, vector<1x4x8x8xf32>
    tpu.vector_store %arg5[%c0_15, %c0_16, %c0_17, %c0_18], %28 {strides = array<i32>} : memref<1x4x8x8xf32, #tpu.memory_space<vmem>>, vector<1x4x8x8xf32>,
    %30 = vector.extract_strided_slice %20 {offsets = [0, 0, 8, 0], sizes = [1, 4, 8, 8], strides = [1, 1, 1, 1]} : vector<1x4x16x16xf32> to vector<1x4x8x8xf32>
    %c0_19 = arith.constant 0 : index
    %c0_20 = arith.constant 0 : index
    %c0_21 = arith.constant 0 : index
    %c0_22 = arith.constant 0 : index
    %31 = vector.load %arg6[%c0_19, %c0_20, %c0_21, %c0_22] : memref<1x4x8x8xf32, #tpu.memory_space<vmem>>, vector<1x4x8x8xf32>
    tpu.vector_store %arg6[%c0_19, %c0_20, %c0_21, %c0_22], %30 {strides = array<i32>} : memref<1x4x8x8xf32, #tpu.memory_space<vmem>>, vector<1x4x8x8xf32>,
    %32 = vector.extract_strided_slice %20 {offsets = [0, 0, 8, 8], sizes = [1, 4, 8, 8], strides = [1, 1, 1, 1]} : vector<1x4x16x16xf32> to vector<1x4x8x8xf32>
    %c0_23 = arith.constant 0 : index
    %c0_24 = arith.constant 0 : index
    %c0_25 = arith.constant 0 : index
    %c0_26 = arith.constant 0 : index
    %33 = vector.load %arg7[%c0_23, %c0_24, %c0_25, %c0_26] : memref<1x4x8x8xf32, #tpu.memory_space<vmem>>, vector<1x4x8x8xf32>
    tpu.vector_store %arg7[%c0_23, %c0_24, %c0_25, %c0_26], %32 {strides = array<i32>} : memref<1x4x8x8xf32, #tpu.memory_space<vmem>>, vector<1x4x8x8xf32>,
    %34 = vector.extract_strided_slice %25 {offsets = [0, 0, 0, 0], sizes = [1, 4, 8, 8], strides = [1, 1, 1, 1]} : vector<1x4x16x16xf32> to vector<1x4x8x8xf32>
    %c0_27 = arith.constant 0 : index
    %c0_28 = arith.constant 0 : index
    %c0_29 = arith.constant 0 : index
    %c0_30 = arith.constant 0 : index
    %35 = vector.load %arg8[%c0_27, %c0_28, %c0_29, %c0_30] : memref<1x4x8x8xf32, #tpu.memory_space<vmem>>, vector<1x4x8x8xf32>
    tpu.vector_store %arg8[%c0_27, %c0_28, %c0_29, %c0_30], %34 {strides = array<i32>} : memref<1x4x8x8xf32, #tpu.memory_space<vmem>>, vector<1x4x8x8xf32>,
    %36 = vector.extract_strided_slice %25 {offsets = [0, 0, 0, 8], sizes = [1, 4, 8, 8], strides = [1, 1, 1, 1]} : vector<1x4x16x16xf32> to vector<1x4x8x8xf32>
    %c0_31 = arith.constant 0 : index
    %c0_32 = arith.constant 0 : index
    %c0_33 = arith.constant 0 : index
    %c0_34 = arith.constant 0 : index
    %37 = vector.load %arg9[%c0_31, %c0_32, %c0_33, %c0_34] : memref<1x4x8x8xf32, #tpu.memory_space<vmem>>, vector<1x4x8x8xf32>
    tpu.vector_store %arg9[%c0_31, %c0_32, %c0_33, %c0_34], %36 {strides = array<i32>} : memref<1x4x8x8xf32, #tpu.memory_space<vmem>>, vector<1x4x8x8xf32>,
    %38 = vector.extract_strided_slice %25 {offsets = [0, 0, 8, 0], sizes = [1, 4, 8, 8], strides = [1, 1, 1, 1]} : vector<1x4x16x16xf32> to vector<1x4x8x8xf32>
    %c0_35 = arith.constant 0 : index
    %c0_36 = arith.constant 0 : index
    %c0_37 = arith.constant 0 : index
    %c0_38 = arith.constant 0 : index
    %39 = vector.load %arg10[%c0_35, %c0_36, %c0_37, %c0_38] : memref<1x4x8x8xf32, #tpu.memory_space<vmem>>, vector<1x4x8x8xf32>
    tpu.vector_store %arg10[%c0_35, %c0_36, %c0_37, %c0_38], %38 {strides = array<i32>} : memref<1x4x8x8xf32, #tpu.memory_space<vmem>>, vector<1x4x8x8xf32>,
    %40 = vector.extract_strided_slice %25 {offsets = [0, 0, 8, 8], sizes = [1, 4, 8, 8], strides = [1, 1, 1, 1]} : vector<1x4x16x16xf32> to vector<1x4x8x8xf32>
    %c0_39 = arith.constant 0 : index
    %c0_40 = arith.constant 0 : index
    %c0_41 = arith.constant 0 : index
    %c0_42 = arith.constant 0 : index
    %41 = vector.load %arg11[%c0_39, %c0_40, %c0_41, %c0_42] : memref<1x4x8x8xf32, #tpu.memory_space<vmem>>, vector<1x4x8x8xf32>
    tpu.vector_store %arg11[%c0_39, %c0_40, %c0_41, %c0_42], %40 {strides = array<i32>} : memref<1x4x8x8xf32, #tpu.memory_space<vmem>>, vector<1x4x8x8xf32>,
    return
  }
  func.func @transform_0(%arg0: i32) -> (i32, i32, i32) {
    %c0_i32 = arith.constant 0 : i32
    %c0_i32_0 = arith.constant 0 : i32
    %c0_i32_1 = arith.constant 0 : i32
    return %arg0, %c0_i32, %c0_i32_0 : i32, i32, i32
  }
  func.func @transform_1(%arg0: i32) -> (i32, i32) {
    %c0_i32 = arith.constant 0 : i32
    %c0_i32_0 = arith.constant 0 : i32
    %c0_i32_1 = arith.constant 0 : i32
    return %c0_i32, %c0_i32_0 : i32, i32
  }
  func.func @transform_2(%arg0: i32) -> (i32, i32) {
    %c0_i32 = arith.constant 0 : i32
    %c0_i32_0 = arith.constant 0 : i32
    %c0_i32_1 = arith.constant 0 : i32
    return %c0_i32, %c0_i32_0 : i32, i32
  }
  func.func @transform_3(%arg0: i32) -> (i32, i32, i32, i32) {
    %c0_i32 = arith.constant 0 : i32
    %c0_i32_0 = arith.constant 0 : i32
    %c0_i32_1 = arith.constant 0 : i32
    %c0_i32_2 = arith.constant 0 : i32
    return %arg0, %c0_i32, %c0_i32_0, %c0_i32_1 : i32, i32, i32, i32
  }
  func.func @transform_4(%arg0: i32) -> (i32, i32, i32, i32) {
    %c0_i32 = arith.constant 0 : i32
    %c0_i32_0 = arith.constant 0 : i32
    %c0_i32_1 = arith.constant 0 : i32
    %c0_i32_2 = arith.constant 0 : i32
    return %arg0, %c0_i32, %c0_i32_0, %c0_i32_1 : i32, i32, i32, i32
  }
  func.func @transform_5(%arg0: i32) -> (i32, i32, i32, i32) {
    %c0_i32 = arith.constant 0 : i32
    %c0_i32_0 = arith.constant 0 : i32
    %c0_i32_1 = arith.constant 0 : i32
    %c0_i32_2 = arith.constant 0 : i32
    return %arg0, %c0_i32, %c0_i32_0, %c0_i32_1 : i32, i32, i32, i32
  }
  func.func @transform_6(%arg0: i32) -> (i32, i32, i32, i32) {
    %c0_i32 = arith.constant 0 : i32
    %c0_i32_0 = arith.constant 0 : i32
    %c0_i32_1 = arith.constant 0 : i32
    %c0_i32_2 = arith.constant 0 : i32
    return %arg0, %c0_i32, %c0_i32_0, %c0_i32_1 : i32, i32, i32, i32
  }
  func.func @transform_7(%arg0: i32) -> (i32, i32, i32, i32) {
    %c0_i32 = arith.constant 0 : i32
    %c0_i32_0 = arith.constant 0 : i32
    %c0_i32_1 = arith.constant 0 : i32
    %c0_i32_2 = arith.constant 0 : i32
    return %arg0, %c0_i32, %c0_i32_0, %c0_i32_1 : i32, i32, i32, i32
  }
  func.func @transform_8(%arg0: i32) -> (i32, i32, i32, i32) {
    %c0_i32 = arith.constant 0 : i32
    %c0_i32_0 = arith.constant 0 : i32
    %c0_i32_1 = arith.constant 0 : i32
    %c0_i32_2 = arith.constant 0 : i32
    return %arg0, %c0_i32, %c0_i32_0, %c0_i32_1 : i32, i32, i32, i32
  }
  func.func @transform_9(%arg0: i32) -> (i32, i32, i32, i32) {
    %c0_i32 = arith.constant 0 : i32
    %c0_i32_0 = arith.constant 0 : i32
    %c0_i32_1 = arith.constant 0 : i32
    %c0_i32_2 = arith.constant 0 : i32
    return %arg0, %c0_i32, %c0_i32_0, %c0_i32_1 : i32, i32, i32, i32
  }
  func.func @transform_10(%arg0: i32) -> (i32, i32, i32, i32) {
    %c0_i32 = arith.constant 0 : i32
    %c0_i32_0 = arith.constant 0 : i32
    %c0_i32_1 = arith.constant 0 : i32
    %c0_i32_2 = arith.constant 0 : i32
    return %arg0, %c0_i32, %c0_i32_0, %c0_i32_1 : i32, i32, i32, i32
  }
}

</mosaic_0001>

<llo_original>
// kernel: tpu_custom_call.1
$region0: #{tpu_custom_call.1}
  #allocation0 [shape = 'u32[]', space=smem, size = 0x4, offset = 0x4, fixed_abs, tag = 'smem constant byte address 0x4 - core index']
  #allocation1 [shape = 'u32[144,128]{1,0:T(1,128)}', space=vmem, size = 0x12000, scoped, tag = 'internal scratch']
  %s0 = inlined_call_operand.vmem [shape: f32[64,16,16], index: 0, kind: input, shape index: {}]
  %s1 = inlined_call_operand.vmem [shape: f32[16,16], index: 1, kind: input, shape index: {}]
  %s2 = inlined_call_operand.vmem [shape: f32[16,16], index: 2, kind: input, shape index: {}]
  %s3 = inlined_call_operand.hbm [shape: f32[8,4,8,8], index: 3, kind: output, shape index: {0}]
  %s4 = inlined_call_operand.hbm [shape: f32[8,4,8,8], index: 4, kind: output, shape index: {1}]
  %s5 = inlined_call_operand.hbm [shape: f32[8,4,8,8], index: 5, kind: output, shape index: {2}]
  %s6 = inlined_call_operand.hbm [shape: f32[8,4,8,8], index: 6, kind: output, shape index: {3}]
  %s7 = inlined_call_operand.hbm [shape: f32[8,4,8,8], index: 7, kind: output, shape index: {4}]
  %s8 = inlined_call_operand.hbm [shape: f32[8,4,8,8], index: 8, kind: output, shape index: {5}]
  %s9 = inlined_call_operand.hbm [shape: f32[8,4,8,8], index: 9, kind: output, shape index: {6}]
  %s10 = inlined_call_operand.hbm [shape: f32[8,4,8,8], index: 10, kind: output, shape index: {7}]
  %11 = xla_tuple %s3, %s4, %s5, %s6, %s7, %s8, %s9, %s10
  %s12 = sld [smem:[#allocation0]]
  $region101: #{tpu_custom_call.1} parent=0
    _
  %s14 = ssub.s32 1, %s12
  %s15 = scalar_select 0, %s14, %s12
  $region1: #{tpu_custom_call.1} parent=0
    #allocation2 [shape = 'u8[32768]{0}', space=vmem, size = 0x8000, scoped, tag = 'output window, operand 0']
    #allocation3 [shape = 's32[2]{0}', space=sflag, size = 0x8, scoped, tag = 'scoped memory for tpu_custom_call.1']
    #allocation4 [shape = 'u8[32768]{0}', space=vmem, size = 0x8000, scoped, tag = 'output window, operand 1']
    #allocation5 [shape = 's32[2]{0}', space=sflag, size = 0x8, scoped, tag = 'scoped memory for tpu_custom_call.1']
    #allocation6 [shape = 'u8[32768]{0}', space=vmem, size = 0x8000, scoped, tag = 'output window, operand 2']
    #allocation7 [shape = 'u8[32768]{0}', space=vmem, size = 0x8000, scoped, tag = 'output window, operand 3']
    #allocation8 [shape = 's32[2]{0}', space=sflag, size = 0x8, scoped, tag = 'scoped memory for tpu_custom_call.1']
    #allocation9 [shape = 'u8[32768]{0}', space=vmem, size = 0x8000, scoped, tag = 'output window, operand 4']
    #allocation10 [shape = 'u8[32768]{0}', space=vmem, size = 0x8000, scoped, tag = 'output window, operand 5']
    #allocation11 [shape = 's32[2]{0}', space=sflag, size = 0x8, scoped, tag = 'scoped memory for tpu_custom_call.1']
    #allocation12 [shape = 'u8[32768]{0}', space=vmem, size = 0x8000, scoped, tag = 'output window, operand 6']
    #allocation13 [shape = 'u8[32768]{0}', space=vmem, size = 0x8000, scoped, tag = 'output window, operand 7']
    #allocation14 [shape = 's32[2]{0}', space=sflag, size = 0x8, scoped, tag = 'scoped memory for tpu_custom_call.1']
    %16 = vsyncpa [#allocation3], 0
    %s17 = scalar_lea.sflag [#allocation3], 1
    %18 = vsyncpa %s17, 0
    %19 = vsyncpa [#allocation5], 0
    %s20 = scalar_lea.sflag [#allocation5], 1
    %21 = vsyncpa %s20, 0
    %22 = vsyncpa [#allocation8], 0
    %s23 = scalar_lea.sflag [#allocation8], 1
    %24 = vsyncpa %s23, 0
    %25 = vsyncpa [#allocation11], 0
    %s26 = scalar_lea.sflag [#allocation11], 1
    %27 = vsyncpa %s26, 0
    %28 = vsyncpa [#allocation14], 0
    %s29 = scalar_lea.sflag [#allocation14], 1
    %30 = vsyncpa %s29, 0
    loop: start=0, step=1, limit=10
    $region2: #{tpu_custom_call.1} parent=1 // loop_pre_header
      _
    $region3: #{tpu_custom_call.1} parent=1 // loop_header
      %s32 = sphi 0, %s36
      %p33 = scmp.ge.s32.totalorder %s32, 10
      %s42 = sphi 0, %s44
      %s45 = sphi 0, %s42
      %s46 = sphi 0, %s45
      %s62 = sphi 0, %s46
      %s66 = sphi 0, %s66
      %s68 = sphi 0, %s66
      %s69 = sphi 0, %s68
      %s83 = sphi 0, %s69
      %s87 = sphi 0, %s87
      %s89 = sphi 0, %s87
      %s90 = sphi 0, %s89
      %s104 = sphi 0, %s90
      %s110 = sphi 0, %s112
      %s113 = sphi 0, %s110
      %s114 = sphi 0, %s113
      %s130 = sphi 0, %s114
      %s136 = sphi 0, %s138
      %s139 = sphi 0, %s136
      %s140 = sphi 0, %s139
      %s156 = sphi 0, %s140
      %s162 = sphi 0, %s164
      %s165 = sphi 0, %s162
      %s166 = sphi 0, %s165
      %s182 = sphi 0, %s166
      %s188 = sphi 0, %s190
      %s191 = sphi 0, %s188
      %s192 = sphi 0, %s191
      %s208 = sphi 0, %s192
      %s214 = sphi 0, %s216
      %s217 = sphi 0, %s214
      %s218 = sphi 0, %s217
      %s234 = sphi 0, %s218
      %s240 = sphi 0, %s242
      %s243 = sphi 0, %s240
      %s244 = sphi 0, %s243
      %s260 = sphi 0, %s244
      %s266 = sphi 0, %s268
      %s269 = sphi 0, %s266
      %s270 = sphi 0, %s269
      %s286 = sphi 0, %s270
      %s292 = sphi 0, %s294
      %s295 = sphi 0, %s292
      %s296 = sphi 0, %s295
      %s312 = sphi 0, %s296
    $region4: #{tpu_custom_call.1} parent=1 // loop_header_branch
      %35 = sbr.rel (%p33) target = $region8
    $region5: #{tpu_custom_call.1} parent=1 // loop_body
      %s37 = ssub.s32 %s32, 1
      %s38 = ssub.s32 %s32, 2
      %s39 = sadd.s32 %s32, 1
      %s40 = ssub.s32 %s32, %s39
      %p41 = scmp.eq.s32.totalorder %s40, 0
      %s43 = sadd.s32 %s42, 1
      %s44 = scalar_select %p41, %s42, %s43
      %p47 = pneg %p41
      %p48 = scmp.eq.s32.totalorder %s32, 7
      %p49 = por %p47, %p48
      %p50 = scmp.ne.s32.totalorder %s42, %s45
      %p51 = scmp.eq.s32.totalorder %s32, 0
      %p52 = por %p50, %p51
      %p53 = scmp.ne.s32.totalorder %s42, %s45
      %p54 = scmp.eq.s32.totalorder %s37, 7
      %p55 = por %p53, %p54
      %p56 = scmp.ne.s32.totalorder %s45, %s46
      %p57 = scmp.eq.s32.totalorder %s37, 0
      %p58 = por %p56, %p57
      %p59 = scmp.ne.s32.totalorder %s45, %s46
      %p60 = scmp.eq.s32.totalorder %s38, 7
      %p61 = por %p59, %p60
      %p63 = scmp.ne.s32.totalorder %s46, %s62
      %p64 = scmp.eq.s32.totalorder %s38, 0
      %p65 = por %p63, %p64
      %s67 = sadd.s32 %s66, 1
      %p70 = scmp.eq.s32.totalorder %s32, 7
      %p71 = scmp.ne.s32.totalorder %s66, %s68
      %p72 = scmp.eq.s32.totalorder %s32, 0
      %p73 = por %p71, %p72
      %p74 = scmp.ne.s32.totalorder %s66, %s68
      %p75 = scmp.eq.s32.totalorder %s37, 7
      %p76 = por %p74, %p75
      %p77 = scmp.ne.s32.totalorder %s68, %s69
      %p78 = scmp.eq.s32.totalorder %s37, 0
      %p79 = por %p77, %p78
      %p80 = scmp.ne.s32.totalorder %s68, %s69
      %p81 = scmp.eq.s32.totalorder %s38, 7
      %p82 = por %p80, %p81
      %p84 = scmp.ne.s32.totalorder %s69, %s83
      %p85 = scmp.eq.s32.totalorder %s38, 0
      %p86 = por %p84, %p85
      %s88 = sadd.s32 %s87, 1
      %p91 = scmp.eq.s32.totalorder %s32, 7
      %p92 = scmp.ne.s32.totalorder %s87, %s89
      %p93 = scmp.eq.s32.totalorder %s32, 0
      %p94 = por %p92, %p93
      %p95 = scmp.ne.s32.totalorder %s87, %s89
      %p96 = scmp.eq.s32.totalorder %s37, 7
      %p97 = por %p95, %p96
      %p98 = scmp.ne.s32.totalorder %s89, %s90
      %p99 = scmp.eq.s32.totalorder %s37, 0
      %p100 = por %p98, %p99
      %p101 = scmp.ne.s32.totalorder %s89, %s90
      %p102 = scmp.eq.s32.totalorder %s38, 7
      %p103 = por %p101, %p102
      %p105 = scmp.ne.s32.totalorder %s90, %s104
      %p106 = scmp.eq.s32.totalorder %s38, 0
      %p107 = por %p105, %p106
      %s108 = ssub.s32 %s32, %s39
      %p109 = scmp.eq.s32.totalorder %s108, 0
      %s111 = sadd.s32 %s110, 1
      %s112 = scalar_select %p109, %s110, %s111
      %p115 = pneg %p109
      %p116 = scmp.eq.s32.totalorder %s32, 7
      %p117 = por %p115, %p116
      %p118 = scmp.ne.s32.totalorder %s110, %s113
      %p119 = scmp.eq.s32.totalorder %s32, 0
      %p120 = por %p118, %p119
      %p121 = scmp.ne.s32.totalorder %s110, %s113
      %p122 = scmp.eq.s32.totalorder %s37, 7
      %p123 = por %p121, %p122
      %p124 = scmp.ne.s32.totalorder %s113, %s114
      %p125 = scmp.eq.s32.totalorder %s37, 0
      %p126 = por %p124, %p125
      %p127 = scmp.ne.s32.totalorder %s113, %s114
      %p128 = scmp.eq.s32.totalorder %s38, 7
      %p129 = por %p127, %p128
      %p131 = scmp.ne.s32.totalorder %s114, %s130
      %p132 = scmp.eq.s32.totalorder %s38, 0
      %p133 = por %p131, %p132
      %s134 = ssub.s32 %s32, %s39
      %p135 = scmp.eq.s32.totalorder %s134, 0
      %s137 = sadd.s32 %s136, 1
      %s138 = scalar_select %p135, %s136, %s137
      %p141 = pneg %p135
      %p142 = scmp.eq.s32.totalorder %s32, 7
      %p143 = por %p141, %p142
      %p144 = scmp.ne.s32.totalorder %s136, %s139
      %p145 = scmp.eq.s32.totalorder %s32, 0
      %p146 = por %p144, %p145
      %p147 = scmp.ne.s32.totalorder %s136, %s139
      %p148 = scmp.eq.s32.totalorder %s37, 7
      %p149 = por %p147, %p148
      %p150 = scmp.ne.s32.totalorder %s139, %s140
      %p151 = scmp.eq.s32.totalorder %s37, 0
      %p152 = por %p150, %p151
      %p153 = scmp.ne.s32.totalorder %s139, %s140
      %p154 = scmp.eq.s32.totalorder %s38, 7
      %p155 = por %p153, %p154
      %p157 = scmp.ne.s32.totalorder %s140, %s156
      %p158 = scmp.eq.s32.totalorder %s38, 0
      %p159 = por %p157, %p158
      %s160 = ssub.s32 %s32, %s39
      %p161 = scmp.eq.s32.totalorder %s160, 0
      %s163 = sadd.s32 %s162, 1
      %s164 = scalar_select %p161, %s162, %s163
      %p167 = pneg %p161
      %p168 = scmp.eq.s32.totalorder %s32, 7
      %p169 = por %p167, %p168
      %p170 = scmp.ne.s32.totalorder %s162, %s165
      %p171 = scmp.eq.s32.totalorder %s32, 0
      %p172 = por %p170, %p171
      %p173 = scmp.ne.s32.totalorder %s162, %s165
      %p174 = scmp.eq.s32.totalorder %s37, 7
      %p175 = por %p173, %p174
      %p176 = scmp.ne.s32.totalorder %s165, %s166
      %p177 = scmp.eq.s32.totalorder %s37, 0
      %p178 = por %p176, %p177
      %p179 = scmp.ne.s32.totalorder %s165, %s166
      %p180 = scmp.eq.s32.totalorder %s38, 7
      %p181 = por %p179, %p180
      %p183 = scmp.ne.s32.totalorder %s166, %s182
      %p184 = scmp.eq.s32.totalorder %s38, 0
      %p185 = por %p183, %p184
      %s186 = ssub.s32 %s32, %s39
      %p187 = scmp.eq.s32.totalorder %s186, 0
      %s189 = sadd.s32 %s188, 1
      %s190 = scalar_select %p187, %s188, %s189
      %p193 = pneg %p187
      %p194 = scmp.eq.s32.totalorder %s32, 7
      %p195 = por %p193, %p194
      %p196 = scmp.ne.s32.totalorder %s188, %s191
      %p197 = scmp.eq.s32.totalorder %s32, 0
      %p198 = por %p196, %p197
      %p199 = scmp.ne.s32.totalorder %s188, %s191
      %p200 = scmp.eq.s32.totalorder %s37, 7
      %p201 = por %p199, %p200
      %p202 = scmp.ne.s32.totalorder %s191, %s192
      %p203 = scmp.eq.s32.totalorder %s37, 0
      %p204 = por %p202, %p203
      %p205 = scmp.ne.s32.totalorder %s191, %s192
      %p206 = scmp.eq.s32.totalorder %s38, 7
      %p207 = por %p205, %p206
      %p209 = scmp.ne.s32.totalorder %s192, %s208
      %p210 = scmp.eq.s32.totalorder %s38, 0
      %p211 = por %p209, %p210
      %s212 = ssub.s32 %s32, %s39
      %p213 = scmp.eq.s32.totalorder %s212, 0
      %s215 = sadd.s32 %s214, 1
      %s216 = scalar_select %p213, %s214, %s215
      %p219 = pneg %p213
      %p220 = scmp.eq.s32.totalorder %s32, 7
      %p221 = por %p219, %p220
      %p222 = scmp.ne.s32.totalorder %s214, %s217
      %p223 = scmp.eq.s32.totalorder %s32, 0
      %p224 = por %p222, %p223
      %p225 = scmp.ne.s32.totalorder %s214, %s217
      %p226 = scmp.eq.s32.totalorder %s37, 7
      %p227 = por %p225, %p226
      %p228 = scmp.ne.s32.totalorder %s217, %s218
      %p229 = scmp.eq.s32.totalorder %s37, 0
      %p230 = por %p228, %p229
      %p231 = scmp.ne.s32.totalorder %s217, %s218
      %p232 = scmp.eq.s32.totalorder %s38, 7
      %p233 = por %p231, %p232
      %p235 = scmp.ne.s32.totalorder %s218, %s234
      %p236 = scmp.eq.s32.totalorder %s38, 0
      %p237 = por %p235, %p236
      %s238 = ssub.s32 %s32, %s39
      %p239 = scmp.eq.s32.totalorder %s238, 0
      %s241 = sadd.s32 %s240, 1
      %s242 = scalar_select %p239, %s240, %s241
      %p245 = pneg %p239
      %p246 = scmp.eq.s32.totalorder %s32, 7
      %p247 = por %p245, %p246
      %p248 = scmp.ne.s32.totalorder %s240, %s243
      %p249 = scmp.eq.s32.totalorder %s32, 0
      %p250 = por %p248, %p249
      %p251 = scmp.ne.s32.totalorder %s240, %s243
      %p252 = scmp.eq.s32.totalorder %s37, 7
      %p253 = por %p251, %p252
      %p254 = scmp.ne.s32.totalorder %s243, %s244
      %p255 = scmp.eq.s32.totalorder %s37, 0
      %p256 = por %p254, %p255
      %p257 = scmp.ne.s32.totalorder %s243, %s244
      %p258 = scmp.eq.s32.totalorder %s38, 7
      %p259 = por %p257, %p258
      %p261 = scmp.ne.s32.totalorder %s244, %s260
      %p262 = scmp.eq.s32.totalorder %s38, 0
      %p263 = por %p261, %p262
      %s264 = ssub.s32 %s32, %s39
      %p265 = scmp.eq.s32.totalorder %s264, 0
      %s267 = sadd.s32 %s266, 1
      %s268 = scalar_select %p265, %s266, %s267
      %p271 = pneg %p265
      %p272 = scmp.eq.s32.totalorder %s32, 7
      %p273 = por %p271, %p272
      %p274 = scmp.ne.s32.totalorder %s266, %s269
      %p275 = scmp.eq.s32.totalorder %s32, 0
      %p276 = por %p274, %p275
      %p277 = scmp.ne.s32.totalorder %s266, %s269
      %p278 = scmp.eq.s32.totalorder %s37, 7
      %p279 = por %p277, %p278
      %p280 = scmp.ne.s32.totalorder %s269, %s270
      %p281 = scmp.eq.s32.totalorder %s37, 0
      %p282 = por %p280, %p281
      %p283 = scmp.ne.s32.totalorder %s269, %s270
      %p284 = scmp.eq.s32.totalorder %s38, 7
      %p285 = por %p283, %p284
      %p287 = scmp.ne.s32.totalorder %s270, %s286
      %p288 = scmp.eq.s32.totalorder %s38, 0
      %p289 = por %p287, %p288
      %s290 = ssub.s32 %s32, %s39
      %p291 = scmp.eq.s32.totalorder %s290, 0
      %s293 = sadd.s32 %s292, 1
      %s294 = scalar_select %p291, %s292, %s293
      %p297 = pneg %p291
      %p298 = scmp.eq.s32.totalorder %s32, 7
      %p299 = por %p297, %p298
      %p300 = scmp.ne.s32.totalorder %s292, %s295
      %p301 = scmp.eq.s32.totalorder %s32, 0
      %p302 = por %p300, %p301
      %p303 = scmp.ne.s32.totalorder %s292, %s295
      %p304 = scmp.eq.s32.totalorder %s37, 7
      %p305 = por %p303, %p304
      %p306 = scmp.ne.s32.totalorder %s295, %s296
      %p307 = scmp.eq.s32.totalorder %s37, 0
      %p308 = por %p306, %p307
      %p309 = scmp.ne.s32.totalorder %s295, %s296
      %p310 = scmp.eq.s32.totalorder %s38, 7
      %p311 = por %p309, %p310
      %p313 = scmp.ne.s32.totalorder %s296, %s312
      %p314 = scmp.eq.s32.totalorder %s38, 0
      %p315 = por %p313, %p314
      %p316 = scmp.le.s32.totalorder 1, %s32
      %p317 = scmp.lt.s32.totalorder %s32, 9
      %p318 = pnand %p316, %p317
      %p319 = pneg %p318
      // Predicated region
      $region9: #{tpu_custom_call.1} parent=5 // pred_check
        _
      $region10: #{tpu_custom_call.1} parent=5 // pred_check_branch
        %321 = sbr.rel (%p318) target = $region12
      $region11: #{tpu_custom_call.1} parent=5 // pred_region
        %s322 = ssub.s32 %s32, 1
        // Predicated region
        $region13: #{tpu_custom_call.1} parent=11 // pred_check
          %p323 = pneg %p79
        $region14: #{tpu_custom_call.1} parent=11 // pred_check_branch
          %325 = sbr.rel (%p323) target = $region16
        $region15: #{tpu_custom_call.1} parent=11 // pred_region
          _
        $region16: #{tpu_custom_call.1} parent=11 // pred_fallthru
          _
        // Predicated region
        $region17: #{tpu_custom_call.1} parent=11 // pred_check
          %p326 = pneg %p100
        $region18: #{tpu_custom_call.1} parent=11 // pred_check_branch
          %328 = sbr.rel (%p326) target = $region20
        $region19: #{tpu_custom_call.1} parent=11 // pred_region
          _
        $region20: #{tpu_custom_call.1} parent=11 // pred_fallthru
          _
      $region12: #{tpu_custom_call.1} parent=5 // pred_fallthru
        _
      %p329 = scmp.lt.s32.totalorder %s32, 8
      // Predicated region
      $region21: #{tpu_custom_call.1} parent=5 // pred_check
        %p330 = pneg %p329
      $region22: #{tpu_custom_call.1} parent=5 // pred_check_branch
        %332 = sbr.rel (%p330) target = $region24
      $region23: #{tpu_custom_call.1} parent=5 // pred_region
        // Predicated region
        $region25: #{tpu_custom_call.1} parent=23 // pred_check
          %p333 = pneg %p52
        $region26: #{tpu_custom_call.1} parent=23 // pred_check_branch
          %335 = sbr.rel (%p333) target = $region28
        $region27: #{tpu_custom_call.1} parent=23 // pred_region
          %s336 = smul.u32 8, %s32
          %p337 = scmp.lt.s32.totalorder %s336, 63
          %s338 = scalar_select %p337, %s336, 63
          %s339 = smul.addr %s338, 2
          %s340 = smul.addr %s339, 8
          %s341 = scalar_lea.vmem %s0, %s340
          %s342 = smul.u32 8, %s32
        $region28: #{tpu_custom_call.1} parent=23 // pred_fallthru
          _
      $region24: #{tpu_custom_call.1} parent=5 // pred_fallthru
        _
      %p343 = scmp.le.s32.totalorder 1, %s32
      %p344 = scmp.lt.s32.totalorder %s32, 9
      %p345 = pnand %p343, %p344
      %p346 = pneg %p345
      // Predicated region
      $region29: #{tpu_custom_call.1} parent=5 // pred_check
        _
      $region30: #{tpu_custom_call.1} parent=5 // pred_check_branch
        %348 = sbr.rel (%p345) target = $region32
      $region31: #{tpu_custom_call.1} parent=5 // pred_region
        %s349 = ssub.s32 %s32, 1
        %s350 = smul.u32 8, %s37
        %p351 = scmp.lt.s32.totalorder %s350, 63
        %s352 = scalar_select %p351, %s350, 63
        %s353 = smul.addr %s352, 2
        %s354 = smul.addr %s353, 8
        %s355 = scalar_lea.vmem %s0, %s354
        %p356 = pneg %p58
        %p357 = pneg %p55
        %p358 = pneg %p79
        %p359 = pneg %p76
        %p360 = pneg %p100
        %p361 = pneg %p97
        %p362 = pneg %p126
        %p363 = pneg %p123
        %s364 = sand.u32 %s113, 1
        %s365 = scalar_lea.sflag [#allocation3], %s364
        %s366 = sand.u32 %s113, 1
        %s367 = smul.addr %s366, 32
        %s368 = scalar_lea.vmem [#allocation2], %s367
        %p369 = pneg %p152
        %p370 = pneg %p149
        %s371 = sand.u32 %s37, 1
        %s372 = scalar_lea.sflag [#allocation5], %s371
        %s373 = sand.u32 %s139, 1
        %s374 = smul.addr %s373, 32
        %s375 = scalar_lea.vmem [#allocation4], %s374
        %p376 = pneg %p178
        %p377 = pneg %p175
        %s378 = sand.u32 %s37, 1
        %s379 = scalar_lea.sflag [#allocation5], %s378
        %s380 = sand.u32 %s165, 1
        %s381 = smul.addr %s380, 32
        %s382 = scalar_lea.vmem [#allocation6], %s381
        %p383 = pneg %p204
        %p384 = pneg %p201
        %s385 = sand.u32 %s37, 1
        %s386 = scalar_lea.sflag [#allocation8], %s385
        %s387 = sand.u32 %s191, 1
        %s388 = smul.addr %s387, 32
        %s389 = scalar_lea.vmem [#allocation7], %s388
        %p390 = pneg %p230
        %p391 = pneg %p227
        %s392 = sand.u32 %s37, 1
        %s393 = scalar_lea.sflag [#allocation8], %s392
        %s394 = sand.u32 %s217, 1
        %s395 = smul.addr %s394, 32
        %s396 = scalar_lea.vmem [#allocation9], %s395
        %p397 = pneg %p256
        %p398 = pneg %p253
        %s399 = sand.u32 %s37, 1
        %s400 = scalar_lea.sflag [#allocation11], %s399
        %s401 = sand.u32 %s243, 1
        %s402 = smul.addr %s401, 32
        %s403 = scalar_lea.vmem [#allocation10], %s402
        %p404 = pneg %p282
        %p405 = pneg %p279
        %s406 = sand.u32 %s37, 1
        %s407 = scalar_lea.sflag [#allocation11], %s406
        %s408 = sand.u32 %s269, 1
        %s409 = smul.addr %s408, 32
        %s410 = scalar_lea.vmem [#allocation12], %s409
        %p411 = pneg %p308
        %p412 = pneg %p305
        %s413 = sand.u32 %s295, 1
        %s414 = scalar_lea.sflag [#allocation14], %s413
        %s415 = sand.u32 %s295, 1
        %s416 = smul.addr %s415, 32
        %s417 = scalar_lea.vmem [#allocation13], %s416
        %s418 = smul.u32 8, %s37
        %p419 = scmp.lt.s32.totalorder %s418, 63
        %s420 = scalar_select %p419, %s418, 63
        %s421 = smul.addr %s420, 2
        %s422 = smul.addr %s421, 8
        %s423 = scalar_lea.vmem %s0, %s422
        %s424 = smul.u32 8, %s37
        %v425 = vld [vmem:[%s423] sm:$0xff]
        %v426 = vld [vmem:[%s423 + $0x8] sm:$0xff]
        %v427 = vld [vmem:[%s423 + $0x10] sm:$0xff]
        %v428 = vld [vmem:[%s423 + $0x18] sm:$0xff]
        %v429 = vld [vmem:[%s423 + $0x20] sm:$0xff]
        %v430 = vld [vmem:[%s423 + $0x28] sm:$0xff]
        %v431 = vld [vmem:[%s423 + $0x30] sm:$0xff]
        %v432 = vld [vmem:[%s423 + $0x38] sm:$0xff]
        %v433 = vld [vmem:[%s423 + $0x40] sm:$0xff]
        %v434 = vld [vmem:[%s423 + $0x48] sm:$0xff]
        %v435 = vld [vmem:[%s423 + $0x50] sm:$0xff]
        %v436 = vld [vmem:[%s423 + $0x58] sm:$0xff]
        %v437 = vld [vmem:[%s423 + $0x60] sm:$0xff]
        %v438 = vld [vmem:[%s423 + $0x68] sm:$0xff]
        %v439 = vld [vmem:[%s423 + $0x70] sm:$0xff]
        %v440 = vld [vmem:[%s423 + $0x78] sm:$0xff]
        %v441 = vld [vmem:[%s1] sm:$0xff]
        %v442 = vld [vmem:[%s1 + $0x8] sm:$0xff]
        %vm443 = vcmask 130048
        %v445 = vsel %vm443, %v425, 0
        %v448 = vsel %vm443, %v426, 0
        %v451 = vsel %vm443, %v427, 0
        %v454 = vsel %vm443, %v428, 0
        %v457 = vsel %vm443, %v429, 0
        %v460 = vsel %vm443, %v430, 0
        %v463 = vsel %vm443, %v431, 0
        %v466 = vsel %vm443, %v432, 0
        %v469 = vsel %vm443, %v433, 0
        %v472 = vsel %vm443, %v434, 0
        %v475 = vsel %vm443, %v435, 0
        %v478 = vsel %vm443, %v436, 0
        %v481 = vsel %vm443, %v437, 0
        %v484 = vsel %vm443, %v438, 0
        %v487 = vsel %vm443, %v439, 0
        %v490 = vsel %vm443, %v440, 0
        %492 = vmatprep.subr.mxu0 0.0
        %493 = vmatpush1.msra.mxu0 %v441
        %494 = vmatprep.subr.mxu0 0.0
        %495 = vmatpush1.msra.mxu0 %v442
        %496 = vmatprep.subr.mxu0 0.0
        %497 = vmatpush1.msra.mxu0 0.0
        %498 = vmatprep.subr.mxu0 0.0
        %499 = vmatpush1.msra.mxu0 0.0
        %500 = vmatprep.subr.mxu0 0.0
        %501 = vmatpush1.msra.mxu0 0.0
        %502 = vmatprep.subr.mxu0 0.0
        %503 = vmatpush1.msra.mxu0 0.0
        %504 = vmatprep.subr.mxu0 0.0
        %505 = vmatpush1.msra.mxu0 0.0
        %506 = vmatprep.subr.mxu0 0.0
        %507 = vmatpush1.msra.mxu0 0.0
        %508 = vmatprep.subr.mxu0 0.0
        %509 = vmatpush1.msra.mxu0 0.0
        %510 = vmatprep.subr.mxu0 0.0
        %511 = vmatpush1.msra.mxu0 0.0
        %512 = vmatprep.subr.mxu0 0.0
        %513 = vmatpush1.msra.mxu0 0.0
        %514 = vmatprep.subr.mxu0 0.0
        %515 = vmatpush1.msra.mxu0 0.0
        %516 = vmatprep.subr.mxu0 0.0
        %517 = vmatpush1.msra.mxu0 0.0
        %518 = vmatprep.subr.mxu0 0.0
        %519 = vmatpush1.msra.mxu0 0.0
        %520 = vmatprep.subr.mxu0 0.0
        %521 = vmatpush1.msra.mxu0 0.0
        %522 = vmatprep.subr.mxu0 0.0
        %523 = vmatpush1.msra.mxu0 0.0
        %524 = vmatprep.subr.mxu0 0.0
        %525 = vmatpush1.msra.mxu0 0.0
        %526 = vmatprep.subr.mxu0 0.0
        %527 = vmatpush1.msra.mxu0 0.0
        %528 = vmatprep.subr.mxu0 0.0
        %529 = vmatpush1.msra.mxu0 0.0
        %530 = vmatprep.subr.mxu0 0.0
        %531 = vmatpush1.msra.mxu0 0.0
        %532 = vmatprep.subr.mxu0 0.0
        %533 = vmatpush1.msra.mxu0 0.0
        %534 = vmatprep.subr.mxu0 0.0
        %535 = vmatpush1.msra.mxu0 0.0
        %536 = vmatprep.subr.mxu0 0.0
        %537 = vmatpush1.msra.mxu0 0.0
        %538 = vmatprep.subr.mxu0 0.0
        %539 = vmatpush1.msra.mxu0 0.0
        %540 = vmatprep.subr.mxu0 0.0
        %541 = vmatpush1.msra.mxu0 0.0
        %542 = vmatprep.subr.mxu0 0.0
        %543 = vmatpush1.msra.mxu0 0.0
        %544 = vmatprep.subr.mxu0 0.0
        %545 = vmatpush1.msra.mxu0 0.0
        %546 = vmatprep.subr.mxu0 0.0
        %547 = vmatpush1.msra.mxu0 0.0
        %548 = vmatprep.subr.mxu0 0.0
        %549 = vmatpush1.msra.mxu0 0.0
        %550 = vmatprep.subr.mxu0 0.0
        %551 = vmatpush1.msra.mxu0 0.0
        %552 = vmatprep.subr.mxu0 0.0
        %553 = vmatpush1.msra.mxu0 0.0
        %554 = vmatprep.subr.mxu0 0.0
        %555 = vmatpush1.msra.mxu0 0.0
        %556 = vmatprep.mubr.f32.mxu0 0.0
        %557 = vmatmul.mubr.f32.gmra.mrb[0].mxu0 %v445
        %v558 = vpop.f32.mrb[0].mxu0
        %v559 = vadd.f32 0.0, %v558
        %v560 = vpop.f32.mrb[0].mxu0
        %561 = vmatprep.mubr.f32.mxu0 0.0
        %562 = vmatmul.mubr.f32.gmra.mrb[0].mxu0 %v448
        %v563 = vpop.f32.mrb[0].mxu0
        %v564 = vadd.f32 0.0, %v563
        %v565 = vpop.f32.mrb[0].mxu0
        %566 = vmatprep.mubr.f32.mxu0 0.0
        %567 = vmatmul.mubr.f32.gmra.mrb[0].mxu0 %v451
        %v568 = vpop.f32.mrb[0].mxu0
        %v569 = vadd.f32 0.0, %v568
        %v570 = vpop.f32.mrb[0].mxu0
        %571 = vmatprep.mubr.f32.mxu0 0.0
        %572 = vmatmul.mubr.f32.gmra.mrb[0].mxu0 %v454
        %v573 = vpop.f32.mrb[0].mxu0
        %v574 = vadd.f32 0.0, %v573
        %v575 = vpop.f32.mrb[0].mxu0
        %576 = vmatprep.mubr.f32.mxu0 0.0
        %577 = vmatmul.mubr.f32.gmra.mrb[0].mxu0 %v457
        %v578 = vpop.f32.mrb[0].mxu0
        %v579 = vadd.f32 0.0, %v578
        %v580 = vpop.f32.mrb[0].mxu0
        %581 = vmatprep.mubr.f32.mxu0 0.0
        %582 = vmatmul.mubr.f32.gmra.mrb[0].mxu0 %v460
        %v583 = vpop.f32.mrb[0].mxu0
        %v584 = vadd.f32 0.0, %v583
        %v585 = vpop.f32.mrb[0].mxu0
        %586 = vmatprep.mubr.f32.mxu0 0.0
        %587 = vmatmul.mubr.f32.gmra.mrb[0].mxu0 %v463
        %v588 = vpop.f32.mrb[0].mxu0
        %v589 = vadd.f32 0.0, %v588
        %v590 = vpop.f32.mrb[0].mxu0
        %591 = vmatprep.mubr.f32.mxu0 0.0
        %592 = vmatmul.mubr.f32.gmra.mrb[0].mxu0 %v466
        %v593 = vpop.f32.mrb[0].mxu0
        %v594 = vadd.f32 0.0, %v593
        %v595 = vpop.f32.mrb[0].mxu0
        %596 = vmatprep.mubr.f32.mxu0 0.0
        %597 = vmatmul.mubr.f32.gmra.mrb[0].mxu0 %v469
        %v598 = vpop.f32.mrb[0].mxu0
        %v599 = vadd.f32 0.0, %v598
        %v600 = vpop.f32.mrb[0].mxu0
        %601 = vmatprep.mubr.f32.mxu0 0.0
        %602 = vmatmul.mubr.f32.gmra.mrb[0].mxu0 %v472
        %v603 = vpop.f32.mrb[0].mxu0
        %v604 = vadd.f32 0.0, %v603
        %v605 = vpop.f32.mrb[0].mxu0
        %606 = vmatprep.mubr.f32.mxu0 0.0
        %607 = vmatmul.mubr.f32.gmra.mrb[0].mxu0 %v475
        %v608 = vpop.f32.mrb[0].mxu0
        %v609 = vadd.f32 0.0, %v608
        %v610 = vpop.f32.mrb[0].mxu0
        %611 = vmatprep.mubr.f32.mxu0 0.0
        %612 = vmatmul.mubr.f32.gmra.mrb[0].mxu0 %v478
        %v613 = vpop.f32.mrb[0].mxu0
        %v614 = vadd.f32 0.0, %v613
        %v615 = vpop.f32.mrb[0].mxu0
        %616 = vmatprep.mubr.f32.mxu0 0.0
        %617 = vmatmul.mubr.f32.gmra.mrb[0].mxu0 %v481
        %v618 = vpop.f32.mrb[0].mxu0
        %v619 = vadd.f32 0.0, %v618
        %v620 = vpop.f32.mrb[0].mxu0
        %621 = vmatprep.mubr.f32.mxu0 0.0
        %622 = vmatmul.mubr.f32.gmra.mrb[0].mxu0 %v484
        %v623 = vpop.f32.mrb[0].mxu0
        %v624 = vadd.f32 0.0, %v623
        %v625 = vpop.f32.mrb[0].mxu0
        %626 = vmatprep.mubr.f32.mxu0 0.0
        %627 = vmatmul.mubr.f32.gmra.mrb[0].mxu0 %v487
        %v628 = vpop.f32.mrb[0].mxu0
        %v629 = vadd.f32 0.0, %v628
        %v630 = vpop.f32.mrb[0].mxu0
        %631 = vmatprep.mubr.f32.mxu0 0.0
        %632 = vmatmul.mubr.f32.gmra.mrb[0].mxu0 %v490
        %v633 = vpop.f32.mrb[0].mxu0
        %v634 = vadd.f32 0.0, %v633
        %v635 = vpop.f32.mrb[0].mxu0
        %636 = vdwg.mxu0
        %637 = vxpose.xlu0.b32.start [1/16] %v559, 128
        %638 = vxpose.xlu0.b32.cont [2/16] %v564, 128
        %639 = vxpose.xlu0.b32.cont [3/16] 0.0, 128
        %640 = vxpose.xlu0.b32.cont [4/16] 0.0, 128
        %641 = vxpose.xlu0.b32.cont [5/16] 0.0, 128
        %642 = vxpose.xlu0.b32.cont [6/16] 0.0, 128
        %643 = vxpose.xlu0.b32.cont [7/16] 0.0, 128
        %644 = vxpose.xlu0.b32.cont [8/16] 0.0, 128
        %645 = vxpose.xlu0.b32.cont [9/16] 0.0, 128
        %646 = vxpose.xlu0.b32.cont [10/16] 0.0, 128
        %647 = vxpose.xlu0.b32.cont [11/16] 0.0, 128
        %648 = vxpose.xlu0.b32.cont [12/16] 0.0, 128
        %649 = vxpose.xlu0.b32.cont [13/16] 0.0, 128
        %650 = vxpose.xlu0.b32.cont [14/16] 0.0, 128
        %651 = vxpose.xlu0.b32.cont [15/16] 0.0, 128
        %652 = vxpose.xlu0.b32.end [16/16] 0.0, 128
        %v653 = vpop.trf.xlu0
        %v654 = vpop.trf.xlu0
        %v655 = vpop.trf.xlu0
        %v656 = vpop.trf.xlu0
        %v657 = vpop.trf.xlu0
        %v658 = vpop.trf.xlu0
        %v659 = vpop.trf.xlu0
        %v660 = vpop.trf.xlu0
        %v661 = vpop.trf.xlu0
        %v662 = vpop.trf.xlu0
        %v663 = vpop.trf.xlu0
        %v664 = vpop.trf.xlu0
        %v665 = vpop.trf.xlu0
        %v666 = vpop.trf.xlu0
        %v667 = vpop.trf.xlu0
        %v668 = vpop.trf.xlu0
        %669 = vxpose.xlu0.b32.start [1/16] %v569, 128
        %670 = vxpose.xlu0.b32.cont [2/16] %v574, 128
        %671 = vxpose.xlu0.b32.cont [3/16] 0.0, 128
        %672 = vxpose.xlu0.b32.cont [4/16] 0.0, 128
        %673 = vxpose.xlu0.b32.cont [5/16] 0.0, 128
        %674 = vxpose.xlu0.b32.cont [6/16] 0.0, 128
        %675 = vxpose.xlu0.b32.cont [7/16] 0.0, 128
        %676 = vxpose.xlu0.b32.cont [8/16] 0.0, 128
        %677 = vxpose.xlu0.b32.cont [9/16] 0.0, 128
        %678 = vxpose.xlu0.b32.cont [10/16] 0.0, 128
        %679 = vxpose.xlu0.b32.cont [11/16] 0.0, 128
        %680 = vxpose.xlu0.b32.cont [12/16] 0.0, 128
        %681 = vxpose.xlu0.b32.cont [13/16] 0.0, 128
        %682 = vxpose.xlu0.b32.cont [14/16] 0.0, 128
        %683 = vxpose.xlu0.b32.cont [15/16] 0.0, 128
        %684 = vxpose.xlu0.b32.end [16/16] 0.0, 128
        %v685 = vpop.trf.xlu0
        %v686 = vpop.trf.xlu0
        %v687 = vpop.trf.xlu0
        %v688 = vpop.trf.xlu0
        %v689 = vpop.trf.xlu0
        %v690 = vpop.trf.xlu0
        %v691 = vpop.trf.xlu0
        %v692 = vpop.trf.xlu0
        %v693 = vpop.trf.xlu0
        %v694 = vpop.trf.xlu0
        %v695 = vpop.trf.xlu0
        %v696 = vpop.trf.xlu0
        %v697 = vpop.trf.xlu0
        %v698 = vpop.trf.xlu0
        %v699 = vpop.trf.xlu0
        %v700 = vpop.trf.xlu0
        %701 = vxpose.xlu0.b32.start [1/16] %v579, 128
        %702 = vxpose.xlu0.b32.cont [2/16] %v584, 128
        %703 = vxpose.xlu0.b32.cont [3/16] 0.0, 128
        %704 = vxpose.xlu0.b32.cont [4/16] 0.0, 128
        %705 = vxpose.xlu0.b32.cont [5/16] 0.0, 128
        %706 = vxpose.xlu0.b32.cont [6/16] 0.0, 128
        %707 = vxpose.xlu0.b32.cont [7/16] 0.0, 128
        %708 = vxpose.xlu0.b32.cont [8/16] 0.0, 128
        %709 = vxpose.xlu0.b32.cont [9/16] 0.0, 128
        %710 = vxpose.xlu0.b32.cont [10/16] 0.0, 128
        %711 = vxpose.xlu0.b32.cont [11/16] 0.0, 128
        %712 = vxpose.xlu0.b32.cont [12/16] 0.0, 128
        %713 = vxpose.xlu0.b32.cont [13/16] 0.0, 128
        %714 = vxpose.xlu0.b32.cont [14/16] 0.0, 128
        %715 = vxpose.xlu0.b32.cont [15/16] 0.0, 128
        %716 = vxpose.xlu0.b32.end [16/16] 0.0, 128
        %v717 = vpop.trf.xlu0
        %v718 = vpop.trf.xlu0
        %v719 = vpop.trf.xlu0
        %v720 = vpop.trf.xlu0
        %v721 = vpop.trf.xlu0
        %v722 = vpop.trf.xlu0
        %v723 = vpop.trf.xlu0
        %v724 = vpop.trf.xlu0
        %v725 = vpop.trf.xlu0
        %v726 = vpop.trf.xlu0
        %v727 = vpop.trf.xlu0
        %v728 = vpop.trf.xlu0
        %v729 = vpop.trf.xlu0
        %v730 = vpop.trf.xlu0
        %v731 = vpop.trf.xlu0
        %v732 = vpop.trf.xlu0
        %733 = vxpose.xlu0.b32.start [1/16] %v589, 128
        %734 = vxpose.xlu0.b32.cont [2/16] %v594, 128
        %735 = vxpose.xlu0.b32.cont [3/16] 0.0, 128
        %736 = vxpose.xlu0.b32.cont [4/16] 0.0, 128
        %737 = vxpose.xlu0.b32.cont [5/16] 0.0, 128
        %738 = vxpose.xlu0.b32.cont [6/16] 0.0, 128
        %739 = vxpose.xlu0.b32.cont [7/16] 0.0, 128
        %740 = vxpose.xlu0.b32.cont [8/16] 0.0, 128
        %741 = vxpose.xlu0.b32.cont [9/16] 0.0, 128
        %742 = vxpose.xlu0.b32.cont [10/16] 0.0, 128
        %743 = vxpose.xlu0.b32.cont [11/16] 0.0, 128
        %744 = vxpose.xlu0.b32.cont [12/16] 0.0, 128
        %745 = vxpose.xlu0.b32.cont [13/16] 0.0, 128
        %746 = vxpose.xlu0.b32.cont [14/16] 0.0, 128
        %747 = vxpose.xlu0.b32.cont [15/16] 0.0, 128
        %748 = vxpose.xlu0.b32.end [16/16] 0.0, 128
        %v749 = vpop.trf.xlu0
        %v750 = vpop.trf.xlu0
        %v751 = vpop.trf.xlu0
        %v752 = vpop.trf.xlu0
        %v753 = vpop.trf.xlu0
        %v754 = vpop.trf.xlu0
        %v755 = vpop.trf.xlu0
        %v756 = vpop.trf.xlu0
        %v757 = vpop.trf.xlu0
        %v758 = vpop.trf.xlu0
        %v759 = vpop.trf.xlu0
        %v760 = vpop.trf.xlu0
        %v761 = vpop.trf.xlu0
        %v762 = vpop.trf.xlu0
        %v763 = vpop.trf.xlu0
        %v764 = vpop.trf.xlu0
        %765 = vxpose.xlu0.b32.start [1/16] %v599, 128
        %766 = vxpose.xlu0.b32.cont [2/16] %v604, 128
        %767 = vxpose.xlu0.b32.cont [3/16] 0.0, 128
        %768 = vxpose.xlu0.b32.cont [4/16] 0.0, 128
        %769 = vxpose.xlu0.b32.cont [5/16] 0.0, 128
        %770 = vxpose.xlu0.b32.cont [6/16] 0.0, 128
        %771 = vxpose.xlu0.b32.cont [7/16] 0.0, 128
        %772 = vxpose.xlu0.b32.cont [8/16] 0.0, 128
        %773 = vxpose.xlu0.b32.cont [9/16] 0.0, 128
        %774 = vxpose.xlu0.b32.cont [10/16] 0.0, 128
        %775 = vxpose.xlu0.b32.cont [11/16] 0.0, 128
        %776 = vxpose.xlu0.b32.cont [12/16] 0.0, 128
        %777 = vxpose.xlu0.b32.cont [13/16] 0.0, 128
        %778 = vxpose.xlu0.b32.cont [14/16] 0.0, 128
        %779 = vxpose.xlu0.b32.cont [15/16] 0.0, 128
        %780 = vxpose.xlu0.b32.end [16/16] 0.0, 128
        %v781 = vpop.trf.xlu0
        %v782 = vpop.trf.xlu0
        %v783 = vpop.trf.xlu0
        %v784 = vpop.trf.xlu0
        %v785 = vpop.trf.xlu0
        %v786 = vpop.trf.xlu0
        %v787 = vpop.trf.xlu0
        %v788 = vpop.trf.xlu0
        %v789 = vpop.trf.xlu0
        %v790 = vpop.trf.xlu0
        %v791 = vpop.trf.xlu0
        %v792 = vpop.trf.xlu0
        %v793 = vpop.trf.xlu0
        %v794 = vpop.trf.xlu0
        %v795 = vpop.trf.xlu0
        %v796 = vpop.trf.xlu0
        %797 = vxpose.xlu0.b32.start [1/16] %v609, 128
        %798 = vxpose.xlu0.b32.cont [2/16] %v614, 128
        %799 = vxpose.xlu0.b32.cont [3/16] 0.0, 128
        %800 = vxpose.xlu0.b32.cont [4/16] 0.0, 128
        %801 = vxpose.xlu0.b32.cont [5/16] 0.0, 128
        %802 = vxpose.xlu0.b32.cont [6/16] 0.0, 128
        %803 = vxpose.xlu0.b32.cont [7/16] 0.0, 128
        %804 = vxpose.xlu0.b32.cont [8/16] 0.0, 128
        %805 = vxpose.xlu0.b32.cont [9/16] 0.0, 128
        %806 = vxpose.xlu0.b32.cont [10/16] 0.0, 128
        %807 = vxpose.xlu0.b32.cont [11/16] 0.0, 128
        %808 = vxpose.xlu0.b32.cont [12/16] 0.0, 128
        %809 = vxpose.xlu0.b32.cont [13/16] 0.0, 128
        %810 = vxpose.xlu0.b32.cont [14/16] 0.0, 128
        %811 = vxpose.xlu0.b32.cont [15/16] 0.0, 128
        %812 = vxpose.xlu0.b32.end [16/16] 0.0, 128
        %v813 = vpop.trf.xlu0
        %v814 = vpop.trf.xlu0
        %v815 = vpop.trf.xlu0
        %v816 = vpop.trf.xlu0
        %v817 = vpop.trf.xlu0
        %v818 = vpop.trf.xlu0
        %v819 = vpop.trf.xlu0
        %v820 = vpop.trf.xlu0
        %v821 = vpop.trf.xlu0
        %v822 = vpop.trf.xlu0
        %v823 = vpop.trf.xlu0
        %v824 = vpop.trf.xlu0
        %v825 = vpop.trf.xlu0
        %v826 = vpop.trf.xlu0
        %v827 = vpop.trf.xlu0
        %v828 = vpop.trf.xlu0
        %829 = vxpose.xlu0.b32.start [1/16] %v619, 128
        %830 = vxpose.xlu0.b32.cont [2/16] %v624, 128
        %831 = vxpose.xlu0.b32.cont [3/16] 0.0, 128
        %832 = vxpose.xlu0.b32.cont [4/16] 0.0, 128
        %833 = vxpose.xlu0.b32.cont [5/16] 0.0, 128
        %834 = vxpose.xlu0.b32.cont [6/16] 0.0, 128
        %835 = vxpose.xlu0.b32.cont [7/16] 0.0, 128
        %836 = vxpose.xlu0.b32.cont [8/16] 0.0, 128
        %837 = vxpose.xlu0.b32.cont [9/16] 0.0, 128
        %838 = vxpose.xlu0.b32.cont [10/16] 0.0, 128
        %839 = vxpose.xlu0.b32.cont [11/16] 0.0, 128
        %840 = vxpose.xlu0.b32.cont [12/16] 0.0, 128
        %841 = vxpose.xlu0.b32.cont [13/16] 0.0, 128
        %842 = vxpose.xlu0.b32.cont [14/16] 0.0, 128
        %843 = vxpose.xlu0.b32.cont [15/16] 0.0, 128
        %844 = vxpose.xlu0.b32.end [16/16] 0.0, 128
        %v845 = vpop.trf.xlu0
        %v846 = vpop.trf.xlu0
        %v847 = vpop.trf.xlu0
        %v848 = vpop.trf.xlu0
        %v849 = vpop.trf.xlu0
        %v850 = vpop.trf.xlu0
        %v851 = vpop.trf.xlu0
        %v852 = vpop.trf.xlu0
        %v853 = vpop.trf.xlu0
        %v854 = vpop.trf.xlu0
        %v855 = vpop.trf.xlu0
        %v856 = vpop.trf.xlu0
        %v857 = vpop.trf.xlu0
        %v858 = vpop.trf.xlu0
        %v859 = vpop.trf.xlu0
        %v860 = vpop.trf.xlu0
        %861 = vxpose.xlu0.b32.start [1/16] %v629, 128
        %862 = vxpose.xlu0.b32.cont [2/16] %v634, 128
        %863 = vxpose.xlu0.b32.cont [3/16] 0.0, 128
        %864 = vxpose.xlu0.b32.cont [4/16] 0.0, 128
        %865 = vxpose.xlu0.b32.cont [5/16] 0.0, 128
        %866 = vxpose.xlu0.b32.cont [6/16] 0.0, 128
        %867 = vxpose.xlu0.b32.cont [7/16] 0.0, 128
        %868 = vxpose.xlu0.b32.cont [8/16] 0.0, 128
        %869 = vxpose.xlu0.b32.cont [9/16] 0.0, 128
        %870 = vxpose.xlu0.b32.cont [10/16] 0.0, 128
        %871 = vxpose.xlu0.b32.cont [11/16] 0.0, 128
        %872 = vxpose.xlu0.b32.cont [12/16] 0.0, 128
        %873 = vxpose.xlu0.b32.cont [13/16] 0.0, 128
        %874 = vxpose.xlu0.b32.cont [14/16] 0.0, 128
        %875 = vxpose.xlu0.b32.cont [15/16] 0.0, 128
        %876 = vxpose.xlu0.b32.end [16/16] 0.0, 128
        %v877 = vpop.trf.xlu0
        %v878 = vpop.trf.xlu0
        %v879 = vpop.trf.xlu0
        %v880 = vpop.trf.xlu0
        %v881 = vpop.trf.xlu0
        %v882 = vpop.trf.xlu0
        %v883 = vpop.trf.xlu0
        %v884 = vpop.trf.xlu0
        %v885 = vpop.trf.xlu0
        %v886 = vpop.trf.xlu0
        %v887 = vpop.trf.xlu0
        %v888 = vpop.trf.xlu0
        %v889 = vpop.trf.xlu0
        %v890 = vpop.trf.xlu0
        %v891 = vpop.trf.xlu0
        %v892 = vpop.trf.xlu0
        %v893 = vld [vmem:[%s2] sm:$0xff]
        %v894 = vld [vmem:[%s2 + $0x8] sm:$0xff]
        %v896 = vsel %vm443, %v653, 0
        %v899 = vsel %vm443, %v654, 0
        %v902 = vsel %vm443, %v685, 0
        %v905 = vsel %vm443, %v686, 0
        %v908 = vsel %vm443, %v717, 0
        %v911 = vsel %vm443, %v718, 0
        %v914 = vsel %vm443, %v749, 0
        %v917 = vsel %vm443, %v750, 0
        %v920 = vsel %vm443, %v781, 0
        %v923 = vsel %vm443, %v782, 0
        %v926 = vsel %vm443, %v813, 0
        %v929 = vsel %vm443, %v814, 0
        %v932 = vsel %vm443, %v845, 0
        %v935 = vsel %vm443, %v846, 0
        %v938 = vsel %vm443, %v877, 0
        %v941 = vsel %vm443, %v878, 0
        %943 = vmatprep.subr.mxu0 0.0
        %944 = vmatpush1.msra.mxu0 %v893
        %945 = vmatprep.subr.mxu0 0.0
        %946 = vmatpush1.msra.mxu0 %v894
        %947 = vmatprep.subr.mxu0 0.0
        %948 = vmatpush1.msra.mxu0 0.0
        %949 = vmatprep.subr.mxu0 0.0
        %950 = vmatpush1.msra.mxu0 0.0
        %951 = vmatprep.subr.mxu0 0.0
        %952 = vmatpush1.msra.mxu0 0.0
        %953 = vmatprep.subr.mxu0 0.0
        %954 = vmatpush1.msra.mxu0 0.0
        %955 = vmatprep.subr.mxu0 0.0
        %956 = vmatpush1.msra.mxu0 0.0
        %957 = vmatprep.subr.mxu0 0.0
        %958 = vmatpush1.msra.mxu0 0.0
        %959 = vmatprep.subr.mxu0 0.0
        %960 = vmatpush1.msra.mxu0 0.0
        %961 = vmatprep.subr.mxu0 0.0
        %962 = vmatpush1.msra.mxu0 0.0
        %963 = vmatprep.subr.mxu0 0.0
        %964 = vmatpush1.msra.mxu0 0.0
        %965 = vmatprep.subr.mxu0 0.0
        %966 = vmatpush1.msra.mxu0 0.0
        %967 = vmatprep.subr.mxu0 0.0
        %968 = vmatpush1.msra.mxu0 0.0
        %969 = vmatprep.subr.mxu0 0.0
        %970 = vmatpush1.msra.mxu0 0.0
        %971 = vmatprep.subr.mxu0 0.0
        %972 = vmatpush1.msra.mxu0 0.0
        %973 = vmatprep.subr.mxu0 0.0
        %974 = vmatpush1.msra.mxu0 0.0
        %975 = vmatprep.subr.mxu0 0.0
        %976 = vmatpush1.msra.mxu0 0.0
        %977 = vmatprep.subr.mxu0 0.0
        %978 = vmatpush1.msra.mxu0 0.0
        %979 = vmatprep.subr.mxu0 0.0
        %980 = vmatpush1.msra.mxu0 0.0
        %981 = vmatprep.subr.mxu0 0.0
        %982 = vmatpush1.msra.mxu0 0.0
        %983 = vmatprep.subr.mxu0 0.0
        %984 = vmatpush1.msra.mxu0 0.0
        %985 = vmatprep.subr.mxu0 0.0
        %986 = vmatpush1.msra.mxu0 0.0
        %987 = vmatprep.subr.mxu0 0.0
        %988 = vmatpush1.msra.mxu0 0.0
        %989 = vmatprep.subr.mxu0 0.0
        %990 = vmatpush1.msra.mxu0 0.0
        %991 = vmatprep.subr.mxu0 0.0
        %992 = vmatpush1.msra.mxu0 0.0
        %993 = vmatprep.subr.mxu0 0.0
        %994 = vmatpush1.msra.mxu0 0.0
        %995 = vmatprep.subr.mxu0 0.0
        %996 = vmatpush1.msra.mxu0 0.0
        %997 = vmatprep.subr.mxu0 0.0
        %998 = vmatpush1.msra.mxu0 0.0
        %999 = vmatprep.subr.mxu0 0.0
        %1000 = vmatpush1.msra.mxu0 0.0
        %1001 = vmatprep.subr.mxu0 0.0
        %1002 = vmatpush1.msra.mxu0 0.0
        %1003 = vmatprep.subr.mxu0 0.0
        %1004 = vmatpush1.msra.mxu0 0.0
        %1005 = vmatprep.subr.mxu0 0.0
        %1006 = vmatpush1.msra.mxu0 0.0
        %1007 = vmatprep.mubr.f32.mxu0 0.0
        %1008 = vmatmul.mubr.f32.gmra.mrb[0].mxu0 %v896
        %v1009 = vpop.f32.mrb[0].mxu0
        %v1010 = vadd.f32 0.0, %v1009
        %v1011 = vpop.f32.mrb[0].mxu0
        %1012 = vmatprep.mubr.f32.mxu0 0.0
        %1013 = vmatmul.mubr.f32.gmra.mrb[0].mxu0 %v899
        %v1014 = vpop.f32.mrb[0].mxu0
        %v1015 = vadd.f32 0.0, %v1014
        %v1016 = vpop.f32.mrb[0].mxu0
        %1017 = vmatprep.mubr.f32.mxu0 0.0
        %1018 = vmatmul.mubr.f32.gmra.mrb[0].mxu0 %v902
        %v1019 = vpop.f32.mrb[0].mxu0
        %v1020 = vadd.f32 0.0, %v1019
        %v1021 = vpop.f32.mrb[0].mxu0
        %1022 = vmatprep.mubr.f32.mxu0 0.0
        %1023 = vmatmul.mubr.f32.gmra.mrb[0].mxu0 %v905
        %v1024 = vpop.f32.mrb[0].mxu0
        %v1025 = vadd.f32 0.0, %v1024
        %v1026 = vpop.f32.mrb[0].mxu0
        %1027 = vmatprep.mubr.f32.mxu0 0.0
        %1028 = vmatmul.mubr.f32.gmra.mrb[0].mxu0 %v908
        %v1029 = vpop.f32.mrb[0].mxu0
        %v1030 = vadd.f32 0.0, %v1029
        %v1031 = vpop.f32.mrb[0].mxu0
        %1032 = vmatprep.mubr.f32.mxu0 0.0
        %1033 = vmatmul.mubr.f32.gmra.mrb[0].mxu0 %v911
        %v1034 = vpop.f32.mrb[0].mxu0
        %v1035 = vadd.f32 0.0, %v1034
        %v1036 = vpop.f32.mrb[0].mxu0
        %1037 = vmatprep.mubr.f32.mxu0 0.0
        %1038 = vmatmul.mubr.f32.gmra.mrb[0].mxu0 %v914
        %v1039 = vpop.f32.mrb[0].mxu0
        %v1040 = vadd.f32 0.0, %v1039
        %v1041 = vpop.f32.mrb[0].mxu0
        %1042 = vmatprep.mubr.f32.mxu0 0.0
        %1043 = vmatmul.mubr.f32.gmra.mrb[0].mxu0 %v917
        %v1044 = vpop.f32.mrb[0].mxu0
        %v1045 = vadd.f32 0.0, %v1044
        %v1046 = vpop.f32.mrb[0].mxu0
        %1047 = vmatprep.mubr.f32.mxu0 0.0
        %1048 = vmatmul.mubr.f32.gmra.mrb[0].mxu0 %v920
        %v1049 = vpop.f32.mrb[0].mxu0
        %v1050 = vadd.f32 0.0, %v1049
        %v1051 = vpop.f32.mrb[0].mxu0
        %1052 = vmatprep.mubr.f32.mxu0 0.0
        %1053 = vmatmul.mubr.f32.gmra.mrb[0].mxu0 %v923
        %v1054 = vpop.f32.mrb[0].mxu0
        %v1055 = vadd.f32 0.0, %v1054
        %v1056 = vpop.f32.mrb[0].mxu0
        %1057 = vmatprep.mubr.f32.mxu0 0.0
        %1058 = vmatmul.mubr.f32.gmra.mrb[0].mxu0 %v926
        %v1059 = vpop.f32.mrb[0].mxu0
        %v1060 = vadd.f32 0.0, %v1059
        %v1061 = vpop.f32.mrb[0].mxu0
        %1062 = vmatprep.mubr.f32.mxu0 0.0
        %1063 = vmatmul.mubr.f32.gmra.mrb[0].mxu0 %v929
        %v1064 = vpop.f32.mrb[0].mxu0
        %v1065 = vadd.f32 0.0, %v1064
        %v1066 = vpop.f32.mrb[0].mxu0
        %1067 = vmatprep.mubr.f32.mxu0 0.0
        %1068 = vmatmul.mubr.f32.gmra.mrb[0].mxu0 %v932
        %v1069 = vpop.f32.mrb[0].mxu0
        %v1070 = vadd.f32 0.0, %v1069
        %v1071 = vpop.f32.mrb[0].mxu0
        %1072 = vmatprep.mubr.f32.mxu0 0.0
        %1073 = vmatmul.mubr.f32.gmra.mrb[0].mxu0 %v935
        %v1074 = vpop.f32.mrb[0].mxu0
        %v1075 = vadd.f32 0.0, %v1074
        %v1076 = vpop.f32.mrb[0].mxu0
        %1077 = vmatprep.mubr.f32.mxu0 0.0
        %1078 = vmatmul.mubr.f32.gmra.mrb[0].mxu0 %v938
        %v1079 = vpop.f32.mrb[0].mxu0
        %v1080 = vadd.f32 0.0, %v1079
        %v1081 = vpop.f32.mrb[0].mxu0
        %1082 = vmatprep.mubr.f32.mxu0 0.0
        %1083 = vmatmul.mubr.f32.gmra.mrb[0].mxu0 %v941
        %v1084 = vpop.f32.mrb[0].mxu0
        %v1085 = vadd.f32 0.0, %v1084
        %v1086 = vpop.f32.mrb[0].mxu0
        %1087 = vdwg.mxu0
        %1088 = vxpose.xlu0.b32.start [1/16] %v1010, 128
        %1089 = vxpose.xlu0.b32.cont [2/16] %v1015, 128
        %1090 = vxpose.xlu0.b32.cont [3/16] 0.0, 128
        %1091 = vxpose.xlu0.b32.cont [4/16] 0.0, 128
        %1092 = vxpose.xlu0.b32.cont [5/16] 0.0, 128
        %1093 = vxpose.xlu0.b32.cont [6/16] 0.0, 128
        %1094 = vxpose.xlu0.b32.cont [7/16] 0.0, 128
        %1095 = vxpose.xlu0.b32.cont [8/16] 0.0, 128
        %1096 = vxpose.xlu0.b32.cont [9/16] 0.0, 128
        %1097 = vxpose.xlu0.b32.cont [10/16] 0.0, 128
        %1098 = vxpose.xlu0.b32.cont [11/16] 0.0, 128
        %1099 = vxpose.xlu0.b32.cont [12/16] 0.0, 128
        %1100 = vxpose.xlu0.b32.cont [13/16] 0.0, 128
        %1101 = vxpose.xlu0.b32.cont [14/16] 0.0, 128
        %1102 = vxpose.xlu0.b32.cont [15/16] 0.0, 128
        %1103 = vxpose.xlu0.b32.end [16/16] 0.0, 128
        %v1104 = vpop.trf.xlu0
        %v1105 = vpop.trf.xlu0
        %v1106 = vpop.trf.xlu0
        %v1107 = vpop.trf.xlu0
        %v1108 = vpop.trf.xlu0
        %v1109 = vpop.trf.xlu0
        %v1110 = vpop.trf.xlu0
        %v1111 = vpop.trf.xlu0
        %v1112 = vpop.trf.xlu0
        %v1113 = vpop.trf.xlu0
        %v1114 = vpop.trf.xlu0
        %v1115 = vpop.trf.xlu0
        %v1116 = vpop.trf.xlu0
        %v1117 = vpop.trf.xlu0
        %v1118 = vpop.trf.xlu0
        %v1119 = vpop.trf.xlu0
        %1120 = vxpose.xlu0.b32.start [1/16] %v1020, 128
        %1121 = vxpose.xlu0.b32.cont [2/16] %v1025, 128
        %1122 = vxpose.xlu0.b32.cont [3/16] 0.0, 128
        %1123 = vxpose.xlu0.b32.cont [4/16] 0.0, 128
        %1124 = vxpose.xlu0.b32.cont [5/16] 0.0, 128
        %1125 = vxpose.xlu0.b32.cont [6/16] 0.0, 128
        %1126 = vxpose.xlu0.b32.cont [7/16] 0.0, 128
        %1127 = vxpose.xlu0.b32.cont [8/16] 0.0, 128
        %1128 = vxpose.xlu0.b32.cont [9/16] 0.0, 128
        %1129 = vxpose.xlu0.b32.cont [10/16] 0.0, 128
        %1130 = vxpose.xlu0.b32.cont [11/16] 0.0, 128
        %1131 = vxpose.xlu0.b32.cont [12/16] 0.0, 128
        %1132 = vxpose.xlu0.b32.cont [13/16] 0.0, 128
        %1133 = vxpose.xlu0.b32.cont [14/16] 0.0, 128
        %1134 = vxpose.xlu0.b32.cont [15/16] 0.0, 128
        %1135 = vxpose.xlu0.b32.end [16/16] 0.0, 128
        %v1136 = vpop.trf.xlu0
        %v1137 = vpop.trf.xlu0
        %v1138 = vpop.trf.xlu0
        %v1139 = vpop.trf.xlu0
        %v1140 = vpop.trf.xlu0
        %v1141 = vpop.trf.xlu0
        %v1142 = vpop.trf.xlu0
        %v1143 = vpop.trf.xlu0
        %v1144 = vpop.trf.xlu0
        %v1145 = vpop.trf.xlu0
        %v1146 = vpop.trf.xlu0
        %v1147 = vpop.trf.xlu0
        %v1148 = vpop.trf.xlu0
        %v1149 = vpop.trf.xlu0
        %v1150 = vpop.trf.xlu0
        %v1151 = vpop.trf.xlu0
        %1152 = vxpose.xlu0.b32.start [1/16] %v1030, 128
        %1153 = vxpose.xlu0.b32.cont [2/16] %v1035, 128
        %1154 = vxpose.xlu0.b32.cont [3/16] 0.0, 128
        %1155 = vxpose.xlu0.b32.cont [4/16] 0.0, 128
        %1156 = vxpose.xlu0.b32.cont [5/16] 0.0, 128
        %1157 = vxpose.xlu0.b32.cont [6/16] 0.0, 128
        %1158 = vxpose.xlu0.b32.cont [7/16] 0.0, 128
        %1159 = vxpose.xlu0.b32.cont [8/16] 0.0, 128
        %1160 = vxpose.xlu0.b32.cont [9/16] 0.0, 128
        %1161 = vxpose.xlu0.b32.cont [10/16] 0.0, 128
        %1162 = vxpose.xlu0.b32.cont [11/16] 0.0, 128
        %1163 = vxpose.xlu0.b32.cont [12/16] 0.0, 128
        %1164 = vxpose.xlu0.b32.cont [13/16] 0.0, 128
        %1165 = vxpose.xlu0.b32.cont [14/16] 0.0, 128
        %1166 = vxpose.xlu0.b32.cont [15/16] 0.0, 128
        %1167 = vxpose.xlu0.b32.end [16/16] 0.0, 128
        %v1168 = vpop.trf.xlu0
        %v1169 = vpop.trf.xlu0
        %v1170 = vpop.trf.xlu0
        %v1171 = vpop.trf.xlu0
        %v1172 = vpop.trf.xlu0
        %v1173 = vpop.trf.xlu0
        %v1174 = vpop.trf.xlu0
        %v1175 = vpop.trf.xlu0
        %v1176 = vpop.trf.xlu0
        %v1177 = vpop.trf.xlu0
        %v1178 = vpop.trf.xlu0
        %v1179 = vpop.trf.xlu0
        %v1180 = vpop.trf.xlu0
        %v1181 = vpop.trf.xlu0
        %v1182 = vpop.trf.xlu0
        %v1183 = vpop.trf.xlu0
        %1184 = vxpose.xlu0.b32.start [1/16] %v1040, 128
        %1185 = vxpose.xlu0.b32.cont [2/16] %v1045, 128
        %1186 = vxpose.xlu0.b32.cont [3/16] 0.0, 128
        %1187 = vxpose.xlu0.b32.cont [4/16] 0.0, 128
        %1188 = vxpose.xlu0.b32.cont [5/16] 0.0, 128
        %1189 = vxpose.xlu0.b32.cont [6/16] 0.0, 128
        %1190 = vxpose.xlu0.b32.cont [7/16] 0.0, 128
        %1191 = vxpose.xlu0.b32.cont [8/16] 0.0, 128
        %1192 = vxpose.xlu0.b32.cont [9/16] 0.0, 128
        %1193 = vxpose.xlu0.b32.cont [10/16] 0.0, 128
        %1194 = vxpose.xlu0.b32.cont [11/16] 0.0, 128
        %1195 = vxpose.xlu0.b32.cont [12/16] 0.0, 128
        %1196 = vxpose.xlu0.b32.cont [13/16] 0.0, 128
        %1197 = vxpose.xlu0.b32.cont [14/16] 0.0, 128
        %1198 = vxpose.xlu0.b32.cont [15/16] 0.0, 128
        %1199 = vxpose.xlu0.b32.end [16/16] 0.0, 128
        %v1200 = vpop.trf.xlu0
        %v1201 = vpop.trf.xlu0
        %v1202 = vpop.trf.xlu0
        %v1203 = vpop.trf.xlu0
        %v1204 = vpop.trf.xlu0
        %v1205 = vpop.trf.xlu0
        %v1206 = vpop.trf.xlu0
        %v1207 = vpop.trf.xlu0
        %v1208 = vpop.trf.xlu0
        %v1209 = vpop.trf.xlu0
        %v1210 = vpop.trf.xlu0
        %v1211 = vpop.trf.xlu0
        %v1212 = vpop.trf.xlu0
        %v1213 = vpop.trf.xlu0
        %v1214 = vpop.trf.xlu0
        %v1215 = vpop.trf.xlu0
        %1216 = vxpose.xlu0.b32.start [1/16] %v1050, 128
        %1217 = vxpose.xlu0.b32.cont [2/16] %v1055, 128
        %1218 = vxpose.xlu0.b32.cont [3/16] 0.0, 128
        %1219 = vxpose.xlu0.b32.cont [4/16] 0.0, 128
        %1220 = vxpose.xlu0.b32.cont [5/16] 0.0, 128
        %1221 = vxpose.xlu0.b32.cont [6/16] 0.0, 128
        %1222 = vxpose.xlu0.b32.cont [7/16] 0.0, 128
        %1223 = vxpose.xlu0.b32.cont [8/16] 0.0, 128
        %1224 = vxpose.xlu0.b32.cont [9/16] 0.0, 128
        %1225 = vxpose.xlu0.b32.cont [10/16] 0.0, 128
        %1226 = vxpose.xlu0.b32.cont [11/16] 0.0, 128
        %1227 = vxpose.xlu0.b32.cont [12/16] 0.0, 128
        %1228 = vxpose.xlu0.b32.cont [13/16] 0.0, 128
        %1229 = vxpose.xlu0.b32.cont [14/16] 0.0, 128
        %1230 = vxpose.xlu0.b32.cont [15/16] 0.0, 128
        %1231 = vxpose.xlu0.b32.end [16/16] 0.0, 128
        %v1232 = vpop.trf.xlu0
        %v1233 = vpop.trf.xlu0
        %v1234 = vpop.trf.xlu0
        %v1235 = vpop.trf.xlu0
        %v1236 = vpop.trf.xlu0
        %v1237 = vpop.trf.xlu0
        %v1238 = vpop.trf.xlu0
        %v1239 = vpop.trf.xlu0
        %v1240 = vpop.trf.xlu0
        %v1241 = vpop.trf.xlu0
        %v1242 = vpop.trf.xlu0
        %v1243 = vpop.trf.xlu0
        %v1244 = vpop.trf.xlu0
        %v1245 = vpop.trf.xlu0
        %v1246 = vpop.trf.xlu0
        %v1247 = vpop.trf.xlu0
        %1248 = vxpose.xlu0.b32.start [1/16] %v1060, 128
        %1249 = vxpose.xlu0.b32.cont [2/16] %v1065, 128
        %1250 = vxpose.xlu0.b32.cont [3/16] 0.0, 128
        %1251 = vxpose.xlu0.b32.cont [4/16] 0.0, 128
        %1252 = vxpose.xlu0.b32.cont [5/16] 0.0, 128
        %1253 = vxpose.xlu0.b32.cont [6/16] 0.0, 128
        %1254 = vxpose.xlu0.b32.cont [7/16] 0.0, 128
        %1255 = vxpose.xlu0.b32.cont [8/16] 0.0, 128
        %1256 = vxpose.xlu0.b32.cont [9/16] 0.0, 128
        %1257 = vxpose.xlu0.b32.cont [10/16] 0.0, 128
        %1258 = vxpose.xlu0.b32.cont [11/16] 0.0, 128
        %1259 = vxpose.xlu0.b32.cont [12/16] 0.0, 128
        %1260 = vxpose.xlu0.b32.cont [13/16] 0.0, 128
        %1261 = vxpose.xlu0.b32.cont [14/16] 0.0, 128
        %1262 = vxpose.xlu0.b32.cont [15/16] 0.0, 128
        %1263 = vxpose.xlu0.b32.end [16/16] 0.0, 128
        %v1264 = vpop.trf.xlu0
        %v1265 = vpop.trf.xlu0
        %v1266 = vpop.trf.xlu0
        %v1267 = vpop.trf.xlu0
        %v1268 = vpop.trf.xlu0
        %v1269 = vpop.trf.xlu0
        %v1270 = vpop.trf.xlu0
        %v1271 = vpop.trf.xlu0
        %v1272 = vpop.trf.xlu0
        %v1273 = vpop.trf.xlu0
        %v1274 = vpop.trf.xlu0
        %v1275 = vpop.trf.xlu0
        %v1276 = vpop.trf.xlu0
        %v1277 = vpop.trf.xlu0
        %v1278 = vpop.trf.xlu0
        %v1279 = vpop.trf.xlu0
        %1280 = vxpose.xlu0.b32.start [1/16] %v1070, 128
        %1281 = vxpose.xlu0.b32.cont [2/16] %v1075, 128
        %1282 = vxpose.xlu0.b32.cont [3/16] 0.0, 128
        %1283 = vxpose.xlu0.b32.cont [4/16] 0.0, 128
        %1284 = vxpose.xlu0.b32.cont [5/16] 0.0, 128
        %1285 = vxpose.xlu0.b32.cont [6/16] 0.0, 128
        %1286 = vxpose.xlu0.b32.cont [7/16] 0.0, 128
        %1287 = vxpose.xlu0.b32.cont [8/16] 0.0, 128
        %1288 = vxpose.xlu0.b32.cont [9/16] 0.0, 128
        %1289 = vxpose.xlu0.b32.cont [10/16] 0.0, 128
        %1290 = vxpose.xlu0.b32.cont [11/16] 0.0, 128
        %1291 = vxpose.xlu0.b32.cont [12/16] 0.0, 128
        %1292 = vxpose.xlu0.b32.cont [13/16] 0.0, 128
        %1293 = vxpose.xlu0.b32.cont [14/16] 0.0, 128
        %1294 = vxpose.xlu0.b32.cont [15/16] 0.0, 128
        %1295 = vxpose.xlu0.b32.end [16/16] 0.0, 128
        %v1296 = vpop.trf.xlu0
        %v1297 = vpop.trf.xlu0
        %v1298 = vpop.trf.xlu0
        %v1299 = vpop.trf.xlu0
        %v1300 = vpop.trf.xlu0
        %v1301 = vpop.trf.xlu0
        %v1302 = vpop.trf.xlu0
        %v1303 = vpop.trf.xlu0
        %v1304 = vpop.trf.xlu0
        %v1305 = vpop.trf.xlu0
        %v1306 = vpop.trf.xlu0
        %v1307 = vpop.trf.xlu0
        %v1308 = vpop.trf.xlu0
        %v1309 = vpop.trf.xlu0
        %v1310 = vpop.trf.xlu0
        %v1311 = vpop.trf.xlu0
        %1312 = vxpose.xlu0.b32.start [1/16] %v1080, 128
        %1313 = vxpose.xlu0.b32.cont [2/16] %v1085, 128
        %1314 = vxpose.xlu0.b32.cont [3/16] 0.0, 128
        %1315 = vxpose.xlu0.b32.cont [4/16] 0.0, 128
        %1316 = vxpose.xlu0.b32.cont [5/16] 0.0, 128
        %1317 = vxpose.xlu0.b32.cont [6/16] 0.0, 128
        %1318 = vxpose.xlu0.b32.cont [7/16] 0.0, 128
        %1319 = vxpose.xlu0.b32.cont [8/16] 0.0, 128
        %1320 = vxpose.xlu0.b32.cont [9/16] 0.0, 128
        %1321 = vxpose.xlu0.b32.cont [10/16] 0.0, 128
        %1322 = vxpose.xlu0.b32.cont [11/16] 0.0, 128
        %1323 = vxpose.xlu0.b32.cont [12/16] 0.0, 128
        %1324 = vxpose.xlu0.b32.cont [13/16] 0.0, 128
        %1325 = vxpose.xlu0.b32.cont [14/16] 0.0, 128
        %1326 = vxpose.xlu0.b32.cont [15/16] 0.0, 128
        %1327 = vxpose.xlu0.b32.end [16/16] 0.0, 128
        %v1328 = vpop.trf.xlu0
        %v1329 = vpop.trf.xlu0
        %v1330 = vpop.trf.xlu0
        %v1331 = vpop.trf.xlu0
        %v1332 = vpop.trf.xlu0
        %v1333 = vpop.trf.xlu0
        %v1334 = vpop.trf.xlu0
        %v1335 = vpop.trf.xlu0
        %v1336 = vpop.trf.xlu0
        %v1337 = vpop.trf.xlu0
        %v1338 = vpop.trf.xlu0
        %v1339 = vpop.trf.xlu0
        %v1340 = vpop.trf.xlu0
        %v1341 = vpop.trf.xlu0
        %v1342 = vpop.trf.xlu0
        %v1343 = vpop.trf.xlu0
        %v1344 = vmul.f32 %v1104, 0.70710677
        %v1345 = vmul.f32 %v1105, 0.70710677
        %v1346 = vmul.f32 %v1168, 0.70710677
        %v1347 = vmul.f32 %v1169, 0.70710677
        %v1348 = vmul.f32 %v1232, 0.70710677
        %v1349 = vmul.f32 %v1233, 0.70710677
        %v1350 = vmul.f32 %v1296, 0.70710677
        %v1351 = vmul.f32 %v1297, 0.70710677
        %v1352 = vmul.f32 %v1136, 0.70710677
        %v1353 = vmul.f32 %v1137, 0.70710677
        %v1354 = vmul.f32 %v1200, 0.70710677
        %v1355 = vmul.f32 %v1201, 0.70710677
        %v1356 = vmul.f32 %v1264, 0.70710677
        %v1357 = vmul.f32 %v1265, 0.70710677
        %v1358 = vmul.f32 %v1328, 0.70710677
        %v1359 = vmul.f32 %v1329, 0.70710677
        %v1360 = vadd.f32 %v1344, %v1352
        %v1361 = vadd.f32 %v1345, %v1353
        %v1362 = vadd.f32 %v1346, %v1354
        %v1363 = vadd.f32 %v1347, %v1355
        %v1364 = vadd.f32 %v1348, %v1356
        %v1365 = vadd.f32 %v1349, %v1357
        %v1366 = vadd.f32 %v1350, %v1358
        %v1367 = vadd.f32 %v1351, %v1359
        %v1368 = vmul.f32 %v1136, -0.70710677
        %v1369 = vmul.f32 %v1137, -0.70710677
        %v1370 = vmul.f32 %v1200, -0.70710677
        %v1371 = vmul.f32 %v1201, -0.70710677
        %v1372 = vmul.f32 %v1264, -0.70710677
        %v1373 = vmul.f32 %v1265, -0.70710677
        %v1374 = vmul.f32 %v1328, -0.70710677
        %v1375 = vmul.f32 %v1329, -0.70710677
        %v1376 = vadd.f32 %v1344, %v1368
        %v1377 = vadd.f32 %v1345, %v1369
        %v1378 = vadd.f32 %v1346, %v1370
        %v1379 = vadd.f32 %v1347, %v1371
        %v1380 = vadd.f32 %v1348, %v1372
        %v1381 = vadd.f32 %v1349, %v1373
        %v1382 = vadd.f32 %v1350, %v1374
        %v1383 = vadd.f32 %v1351, %v1375
        %vm1384 = vcmask 64512
        %1385 = vst.msk [vmem:[%s368] sm:$0xff] %vm1384, %v1360
        %1386 = vst.msk [vmem:[%s368 + $0x8] sm:$0xff] %vm1384, %v1362
        %1387 = vst.msk [vmem:[%s368 + $0x10] sm:$0xff] %vm1384, %v1364
        %1388 = vst.msk [vmem:[%s368 + $0x18] sm:$0xff] %vm1384, %v1366
        %1393 = vrot.lane.b32.xlu0 %v1360, 120
        %v1394 = vpop.permute.xlu0 %1393
        %1395 = vrot.lane.b32.xlu0 %v1362, 120
        %v1396 = vpop.permute.xlu0 %1395
        %1397 = vrot.lane.b32.xlu0 %v1364, 120
        %v1398 = vpop.permute.xlu0 %1397
        %1399 = vrot.lane.b32.xlu0 %v1366, 120
        %v1400 = vpop.permute.xlu0 %1399
        %1405 = vst.msk [vmem:[%s375] sm:$0xff] %vm1384, %v1394
        %1406 = vst.msk [vmem:[%s375 + $0x8] sm:$0xff] %vm1384, %v1396
        %1407 = vst.msk [vmem:[%s375 + $0x10] sm:$0xff] %vm1384, %v1398
        %1408 = vst.msk [vmem:[%s375 + $0x18] sm:$0xff] %vm1384, %v1400
        %1409 = vst.msk [vmem:[%s382] sm:$0xff] %vm1384, %v1361
        %1410 = vst.msk [vmem:[%s382 + $0x8] sm:$0xff] %vm1384, %v1363
        %1411 = vst.msk [vmem:[%s382 + $0x10] sm:$0xff] %vm1384, %v1365
        %1412 = vst.msk [vmem:[%s382 + $0x18] sm:$0xff] %vm1384, %v1367
        %1417 = vrot.lane.b32.xlu0 %v1361, 120
        %v1418 = vpop.permute.xlu0 %1417
        %1419 = vrot.lane.b32.xlu0 %v1363, 120
        %v1420 = vpop.permute.xlu0 %1419
        %1421 = vrot.lane.b32.xlu0 %v1365, 120
        %v1422 = vpop.permute.xlu0 %1421
        %1423 = vrot.lane.b32.xlu0 %v1367, 120
        %v1424 = vpop.permute.xlu0 %1423
        %1429 = vst.msk [vmem:[%s389] sm:$0xff] %vm1384, %v1418
        %1430 = vst.msk [vmem:[%s389 + $0x8] sm:$0xff] %vm1384, %v1420
        %1431 = vst.msk [vmem:[%s389 + $0x10] sm:$0xff] %vm1384, %v1422
        %1432 = vst.msk [vmem:[%s389 + $0x18] sm:$0xff] %vm1384, %v1424
        %1433 = vst.msk [vmem:[%s396] sm:$0xff] %vm1384, %v1376
        %1434 = vst.msk [vmem:[%s396 + $0x8] sm:$0xff] %vm1384, %v1378
        %1435 = vst.msk [vmem:[%s396 + $0x10] sm:$0xff] %vm1384, %v1380
        %1436 = vst.msk [vmem:[%s396 + $0x18] sm:$0xff] %vm1384, %v1382
        %1441 = vrot.lane.b32.xlu0 %v1376, 120
        %v1442 = vpop.permute.xlu0 %1441
        %1443 = vrot.lane.b32.xlu0 %v1378, 120
        %v1444 = vpop.permute.xlu0 %1443
        %1445 = vrot.lane.b32.xlu0 %v1380, 120
        %v1446 = vpop.permute.xlu0 %1445
        %1447 = vrot.lane.b32.xlu0 %v1382, 120
        %v1448 = vpop.permute.xlu0 %1447
        %1453 = vst.msk [vmem:[%s403] sm:$0xff] %vm1384, %v1442
        %1454 = vst.msk [vmem:[%s403 + $0x8] sm:$0xff] %vm1384, %v1444
        %1455 = vst.msk [vmem:[%s403 + $0x10] sm:$0xff] %vm1384, %v1446
        %1456 = vst.msk [vmem:[%s403 + $0x18] sm:$0xff] %vm1384, %v1448
        %1457 = vst.msk [vmem:[%s410] sm:$0xff] %vm1384, %v1377
        %1458 = vst.msk [vmem:[%s410 + $0x8] sm:$0xff] %vm1384, %v1379
        %1459 = vst.msk [vmem:[%s410 + $0x10] sm:$0xff] %vm1384, %v1381
        %1460 = vst.msk [vmem:[%s410 + $0x18] sm:$0xff] %vm1384, %v1383
        %1465 = vrot.lane.b32.xlu0 %v1377, 120
        %v1466 = vpop.permute.xlu0 %1465
        %1467 = vrot.lane.b32.xlu0 %v1379, 120
        %v1468 = vpop.permute.xlu0 %1467
        %1469 = vrot.lane.b32.xlu0 %v1381, 120
        %v1470 = vpop.permute.xlu0 %1469
        %1471 = vrot.lane.b32.xlu0 %v1383, 120
        %v1472 = vpop.permute.xlu0 %1471
        %1477 = vst.msk [vmem:[%s417] sm:$0xff] %vm1384, %v1466
        %1478 = vst.msk [vmem:[%s417 + $0x8] sm:$0xff] %vm1384, %v1468
        %1479 = vst.msk [vmem:[%s417 + $0x10] sm:$0xff] %vm1384, %v1470
        %1480 = vst.msk [vmem:[%s417 + $0x18] sm:$0xff] %vm1384, %v1472
        %s1481 = sand.u32 %s113, 1
        %s1482 = scalar_lea.sflag [#allocation3], %s1481
        %s1483 = sand.u32 %s113, 1
        %s1484 = smul.addr %s1483, 32
        %s1485 = scalar_lea.vmem [#allocation2], %s1484
        %s1486 = sand.u32 %s37, 1
        %s1487 = scalar_lea.sflag [#allocation5], %s1486
        %s1488 = sand.u32 %s139, 1
        %s1489 = smul.addr %s1488, 32
        %s1490 = scalar_lea.vmem [#allocation4], %s1489
        %s1491 = sand.u32 %s37, 1
        %s1492 = scalar_lea.sflag [#allocation5], %s1491
        %s1493 = sand.u32 %s165, 1
        %s1494 = smul.addr %s1493, 32
        %s1495 = scalar_lea.vmem [#allocation6], %s1494
        %s1496 = sand.u32 %s37, 1
        %s1497 = scalar_lea.sflag [#allocation8], %s1496
        %s1498 = sand.u32 %s191, 1
        %s1499 = smul.addr %s1498, 32
        %s1500 = scalar_lea.vmem [#allocation7], %s1499
        %s1501 = sand.u32 %s37, 1
        %s1502 = scalar_lea.sflag [#allocation8], %s1501
        %s1503 = sand.u32 %s217, 1
        %s1504 = smul.addr %s1503, 32
        %s1505 = scalar_lea.vmem [#allocation9], %s1504
        %s1506 = sand.u32 %s37, 1
        %s1507 = scalar_lea.sflag [#allocation11], %s1506
        %s1508 = sand.u32 %s243, 1
        %s1509 = smul.addr %s1508, 32
        %s1510 = scalar_lea.vmem [#allocation10], %s1509
        %s1511 = sand.u32 %s37, 1
        %s1512 = scalar_lea.sflag [#allocation11], %s1511
        %s1513 = sand.u32 %s269, 1
        %s1514 = smul.addr %s1513, 32
        %s1515 = scalar_lea.vmem [#allocation12], %s1514
        %s1516 = sand.u32 %s295, 1
        %s1517 = scalar_lea.sflag [#allocation14], %s1516
        %s1518 = sand.u32 %s295, 1
        %s1519 = smul.addr %s1518, 32
        %s1520 = scalar_lea.vmem [#allocation13], %s1519
        // Predicated region
        $region33: #{tpu_custom_call.1} parent=31 // pred_check
          %p1521 = pneg %p123
        $region34: #{tpu_custom_call.1} parent=31 // pred_check_branch
          %1523 = sbr.rel (%p1521) target = $region36
        $region35: #{tpu_custom_call.1} parent=31 // pred_region
          %s1525 = ssub.s32 512, 512
          %1526 = vsyncadd %s1482, %s1525
          %s1527 = smul.addr %s37, 4
          %s1528 = smul.addr %s1527, 128
          %s1529 = scalar_lea.hbm %s3, %s1528
          %s1530 = sshll.u32 %s1485, 4
          %s1531 = int_to_ptr.vmem [resolvable:$true] %s1530
          %1536 = dma.vmem_to_hbm [thread:$0]  %s1531, 512, %s1529, %s1482, 128, 128, 8
        $region36: #{tpu_custom_call.1} parent=31 // pred_fallthru
          _
        // Predicated region
        $region37: #{tpu_custom_call.1} parent=31 // pred_check
          %p1537 = pneg %p149
        $region38: #{tpu_custom_call.1} parent=31 // pred_check_branch
          %1539 = sbr.rel (%p1537) target = $region40
        $region39: #{tpu_custom_call.1} parent=31 // pred_region
          %s1541 = ssub.s32 512, 512
          %1542 = vsyncadd %s1487, %s1541
          %s1543 = smul.addr %s37, 4
          %s1544 = smul.addr %s1543, 128
          %s1545 = scalar_lea.hbm %s4, %s1544
          %s1546 = sshll.u32 %s1490, 4
          %s1547 = int_to_ptr.vmem [resolvable:$true] %s1546
          %1552 = dma.vmem_to_hbm [thread:$0]  %s1547, 512, %s1545, %s1487, 128, 128, 8
        $region40: #{tpu_custom_call.1} parent=31 // pred_fallthru
          _
        // Predicated region
        $region41: #{tpu_custom_call.1} parent=31 // pred_check
          %p1553 = pneg %p175
        $region42: #{tpu_custom_call.1} parent=31 // pred_check_branch
          %1555 = sbr.rel (%p1553) target = $region44
        $region43: #{tpu_custom_call.1} parent=31 // pred_region
          %s1557 = ssub.s32 512, 512
          %1558 = vsyncadd %s1492, %s1557
          %s1559 = smul.addr %s37, 4
          %s1560 = smul.addr %s1559, 128
          %s1561 = scalar_lea.hbm %s5, %s1560
          %s1562 = sshll.u32 %s1495, 4
          %s1563 = int_to_ptr.vmem [resolvable:$true] %s1562
          %1568 = dma.vmem_to_hbm [thread:$0]  %s1563, 512, %s1561, %s1492, 128, 128, 8
        $region44: #{tpu_custom_call.1} parent=31 // pred_fallthru
          _
        // Predicated region
        $region45: #{tpu_custom_call.1} parent=31 // pred_check
          %p1569 = pneg %p201
        $region46: #{tpu_custom_call.1} parent=31 // pred_check_branch
          %1571 = sbr.rel (%p1569) target = $region48
        $region47: #{tpu_custom_call.1} parent=31 // pred_region
          %s1573 = ssub.s32 512, 512
          %1574 = vsyncadd %s1497, %s1573
          %s1575 = smul.addr %s37, 4
          %s1576 = smul.addr %s1575, 128
          %s1577 = scalar_lea.hbm %s6, %s1576
          %s1578 = sshll.u32 %s1500, 4
          %s1579 = int_to_ptr.vmem [resolvable:$true] %s1578
          %1584 = dma.vmem_to_hbm [thread:$0]  %s1579, 512, %s1577, %s1497, 128, 128, 8
        $region48: #{tpu_custom_call.1} parent=31 // pred_fallthru
          _
        // Predicated region
        $region49: #{tpu_custom_call.1} parent=31 // pred_check
          %p1585 = pneg %p227
        $region50: #{tpu_custom_call.1} parent=31 // pred_check_branch
          %1587 = sbr.rel (%p1585) target = $region52
        $region51: #{tpu_custom_call.1} parent=31 // pred_region
          %s1589 = ssub.s32 512, 512
          %1590 = vsyncadd %s1502, %s1589
          %s1591 = smul.addr %s37, 4
          %s1592 = smul.addr %s1591, 128
          %s1593 = scalar_lea.hbm %s7, %s1592
          %s1594 = sshll.u32 %s1505, 4
          %s1595 = int_to_ptr.vmem [resolvable:$true] %s1594
          %1600 = dma.vmem_to_hbm [thread:$0]  %s1595, 512, %s1593, %s1502, 128, 128, 8
        $region52: #{tpu_custom_call.1} parent=31 // pred_fallthru
          _
        // Predicated region
        $region53: #{tpu_custom_call.1} parent=31 // pred_check
          %p1601 = pneg %p253
        $region54: #{tpu_custom_call.1} parent=31 // pred_check_branch
          %1603 = sbr.rel (%p1601) target = $region56
        $region55: #{tpu_custom_call.1} parent=31 // pred_region
          %s1605 = ssub.s32 512, 512
          %1606 = vsyncadd %s1507, %s1605
          %s1607 = smul.addr %s37, 4
          %s1608 = smul.addr %s1607, 128
          %s1609 = scalar_lea.hbm %s8, %s1608
          %s1610 = sshll.u32 %s1510, 4
          %s1611 = int_to_ptr.vmem [resolvable:$true] %s1610
          %1616 = dma.vmem_to_hbm [thread:$0]  %s1611, 512, %s1609, %s1507, 128, 128, 8
        $region56: #{tpu_custom_call.1} parent=31 // pred_fallthru
          _
        // Predicated region
        $region57: #{tpu_custom_call.1} parent=31 // pred_check
          %p1617 = pneg %p279
        $region58: #{tpu_custom_call.1} parent=31 // pred_check_branch
          %1619 = sbr.rel (%p1617) target = $region60
        $region59: #{tpu_custom_call.1} parent=31 // pred_region
          %s1621 = ssub.s32 512, 512
          %1622 = vsyncadd %s1512, %s1621
          %s1623 = smul.addr %s37, 4
          %s1624 = smul.addr %s1623, 128
          %s1625 = scalar_lea.hbm %s9, %s1624
          %s1626 = sshll.u32 %s1515, 4
          %s1627 = int_to_ptr.vmem [resolvable:$true] %s1626
          %1632 = dma.vmem_to_hbm [thread:$0]  %s1627, 512, %s1625, %s1512, 128, 128, 8
        $region60: #{tpu_custom_call.1} parent=31 // pred_fallthru
          _
        // Predicated region
        $region61: #{tpu_custom_call.1} parent=31 // pred_check
          %p1633 = pneg %p305
        $region62: #{tpu_custom_call.1} parent=31 // pred_check_branch
          %1635 = sbr.rel (%p1633) target = $region64
        $region63: #{tpu_custom_call.1} parent=31 // pred_region
          %s1637 = ssub.s32 512, 512
          %1638 = vsyncadd %s1517, %s1637
          %s1639 = smul.addr %s37, 4
          %s1640 = smul.addr %s1639, 128
          %s1641 = scalar_lea.hbm %s10, %s1640
          %s1642 = sshll.u32 %s1520, 4
          %s1643 = int_to_ptr.vmem [resolvable:$true] %s1642
          %1648 = dma.vmem_to_hbm [thread:$0]  %s1643, 512, %s1641, %s1517, 128, 128, 8
        $region64: #{tpu_custom_call.1} parent=31 // pred_fallthru
          _
      $region32: #{tpu_custom_call.1} parent=5 // pred_fallthru
        _
      %p1649 = scmp.le.s32.totalorder 2, %s32
      // Predicated region
      $region65: #{tpu_custom_call.1} parent=5 // pred_check
        %p1650 = pneg %p1649
      $region66: #{tpu_custom_call.1} parent=5 // pred_check_branch
        %1652 = sbr.rel (%p1650) target = $region68
      $region67: #{tpu_custom_call.1} parent=5 // pred_region
        %s1653 = ssub.s32 %s32, 2
        // Predicated region
        $region69: #{tpu_custom_call.1} parent=67 // pred_check
          %p1654 = pneg %p129
        $region70: #{tpu_custom_call.1} parent=67 // pred_check_branch
          %1656 = sbr.rel (%p1654) target = $region72
        $region71: #{tpu_custom_call.1} parent=67 // pred_region
          %s1657 = sand.u32 %s114, 1
          %s1658 = scalar_lea.sflag [#allocation3], %s1657
          %s1659 = sand.u32 %s114, 1
          %s1660 = smul.addr %s1659, 32
          %s1661 = scalar_lea.vmem [#allocation2], %s1660
          %1662 = dma.done %s1658, 512
        $region72: #{tpu_custom_call.1} parent=67 // pred_fallthru
          _
        // Predicated region
        $region73: #{tpu_custom_call.1} parent=67 // pred_check
          %p1663 = pneg %p155
        $region74: #{tpu_custom_call.1} parent=67 // pred_check_branch
          %1665 = sbr.rel (%p1663) target = $region76
        $region75: #{tpu_custom_call.1} parent=67 // pred_region
          %s1666 = sand.u32 %s38, 1
          %s1667 = scalar_lea.sflag [#allocation5], %s1666
          %s1668 = sand.u32 %s140, 1
          %s1669 = smul.addr %s1668, 32
          %s1670 = scalar_lea.vmem [#allocation4], %s1669
          %1671 = dma.done %s1667, 512
        $region76: #{tpu_custom_call.1} parent=67 // pred_fallthru
          _
        // Predicated region
        $region77: #{tpu_custom_call.1} parent=67 // pred_check
          %p1672 = pneg %p181
        $region78: #{tpu_custom_call.1} parent=67 // pred_check_branch
          %1674 = sbr.rel (%p1672) target = $region80
        $region79: #{tpu_custom_call.1} parent=67 // pred_region
          %s1675 = sand.u32 %s38, 1
          %s1676 = scalar_lea.sflag [#allocation5], %s1675
          %s1677 = sand.u32 %s166, 1
          %s1678 = smul.addr %s1677, 32
          %s1679 = scalar_lea.vmem [#allocation6], %s1678
          %1680 = dma.done %s1676, 512
        $region80: #{tpu_custom_call.1} parent=67 // pred_fallthru
          _
        // Predicated region
        $region81: #{tpu_custom_call.1} parent=67 // pred_check
          %p1681 = pneg %p207
        $region82: #{tpu_custom_call.1} parent=67 // pred_check_branch
          %1683 = sbr.rel (%p1681) target = $region84
        $region83: #{tpu_custom_call.1} parent=67 // pred_region
          %s1684 = sand.u32 %s38, 1
          %s1685 = scalar_lea.sflag [#allocation8], %s1684
          %s1686 = sand.u32 %s192, 1
          %s1687 = smul.addr %s1686, 32
          %s1688 = scalar_lea.vmem [#allocation7], %s1687
          %1689 = dma.done %s1685, 512
        $region84: #{tpu_custom_call.1} parent=67 // pred_fallthru
          _
        // Predicated region
        $region85: #{tpu_custom_call.1} parent=67 // pred_check
          %p1690 = pneg %p233
        $region86: #{tpu_custom_call.1} parent=67 // pred_check_branch
          %1692 = sbr.rel (%p1690) target = $region88
        $region87: #{tpu_custom_call.1} parent=67 // pred_region
          %s1693 = sand.u32 %s38, 1
          %s1694 = scalar_lea.sflag [#allocation8], %s1693
          %s1695 = sand.u32 %s218, 1
          %s1696 = smul.addr %s1695, 32
          %s1697 = scalar_lea.vmem [#allocation9], %s1696
          %1698 = dma.done %s1694, 512
        $region88: #{tpu_custom_call.1} parent=67 // pred_fallthru
          _
        // Predicated region
        $region89: #{tpu_custom_call.1} parent=67 // pred_check
          %p1699 = pneg %p259
        $region90: #{tpu_custom_call.1} parent=67 // pred_check_branch
          %1701 = sbr.rel (%p1699) target = $region92
        $region91: #{tpu_custom_call.1} parent=67 // pred_region
          %s1702 = sand.u32 %s38, 1
          %s1703 = scalar_lea.sflag [#allocation11], %s1702
          %s1704 = sand.u32 %s244, 1
          %s1705 = smul.addr %s1704, 32
          %s1706 = scalar_lea.vmem [#allocation10], %s1705
          %1707 = dma.done %s1703, 512
        $region92: #{tpu_custom_call.1} parent=67 // pred_fallthru
          _
        // Predicated region
        $region93: #{tpu_custom_call.1} parent=67 // pred_check
          %p1708 = pneg %p285
        $region94: #{tpu_custom_call.1} parent=67 // pred_check_branch
          %1710 = sbr.rel (%p1708) target = $region96
        $region95: #{tpu_custom_call.1} parent=67 // pred_region
          %s1711 = sand.u32 %s38, 1
          %s1712 = scalar_lea.sflag [#allocation11], %s1711
          %s1713 = sand.u32 %s270, 1
          %s1714 = smul.addr %s1713, 32
          %s1715 = scalar_lea.vmem [#allocation12], %s1714
          %1716 = dma.done %s1712, 512
        $region96: #{tpu_custom_call.1} parent=67 // pred_fallthru
          _
        // Predicated region
        $region97: #{tpu_custom_call.1} parent=67 // pred_check
          %p1717 = pneg %p311
        $region98: #{tpu_custom_call.1} parent=67 // pred_check_branch
          %1719 = sbr.rel (%p1717) target = $region100
        $region99: #{tpu_custom_call.1} parent=67 // pred_region
          %s1720 = sand.u32 %s296, 1
          %s1721 = scalar_lea.sflag [#allocation14], %s1720
          %s1722 = sand.u32 %s296, 1
          %s1723 = smul.addr %s1722, 32
          %s1724 = scalar_lea.vmem [#allocation13], %s1723
          %1725 = dma.done %s1721, 512
        $region100: #{tpu_custom_call.1} parent=67 // pred_fallthru
          _
      $region68: #{tpu_custom_call.1} parent=5 // pred_fallthru
        _
    $region6: #{tpu_custom_call.1} parent=1 // loop_footer
      %s36 = sadd.s32 1, %s32
    $region7: #{tpu_custom_call.1} parent=1 // loop_footer_branch
      %31 = sbr.rel target = $region3
    $region8: #{tpu_custom_call.1} parent=1 // loop_exit
      _
    %1726 = vsyncpa [#allocation3], 1
    %s1727 = scalar_lea.sflag [#allocation3], 1
    %1728 = vsyncpa %s1727, 1
    %1729 = vsyncpa [#allocation5], 1
    %s1730 = scalar_lea.sflag [#allocation5], 1
    %1731 = vsyncpa %s1730, 1
    %1732 = vsyncpa [#allocation8], 1
    %s1733 = scalar_lea.sflag [#allocation8], 1
    %1734 = vsyncpa %s1733, 1
    %1735 = vsyncpa [#allocation11], 1
    %s1736 = scalar_lea.sflag [#allocation11], 1
    %1737 = vsyncpa %s1736, 1
    %1738 = vsyncpa [#allocation14], 1
    %s1739 = scalar_lea.sflag [#allocation14], 1
    %1740 = vsyncpa %s1739, 1

</llo_original>
